<compile_context>
chip_gen: v7x
topology: tpu7x:2x2x1
jax: 0.10.0
libtpu: 0.0.40
codegen_flags: <defaults>
</compile_context>

<pallas_src>
import functools
import math

import jax
import jax.numpy as jnp
from jax import lax
from jax.experimental import pallas as pl
from jax.experimental.pallas import tpu as pltpu


# --------------------------- fused encoder-layer kernel ---------------------------

def _encoder_layer_kernel(*refs, num_heads, eps, use_pos):
    if use_pos:
        (src_ref, pos_ref, wq_ref, wk_ref, wv_ref, wo_ref,
         w1_ref, b1_ref, w2_ref, b2_ref,
         g1_ref, beta1_ref, g2_ref, beta2_ref, out_ref) = refs
    else:
        (src_ref, wq_ref, wk_ref, wv_ref, wo_ref,
         w1_ref, b1_ref, w2_ref, b2_ref,
         g1_ref, beta1_ref, g2_ref, beta2_ref, out_ref) = refs
        pos_ref = None

    NB, L, E = src_ref.shape            # block: NB batch elements x L tokens x E channels
    M = NB * L
    H = num_heads
    f32 = jnp.float32
    bf16 = jnp.bfloat16

    src = src_ref[...].reshape(M, E)    # free leading-dim merge; f32

    def layer_norm(x, g, b):
        mean = jnp.mean(x, axis=-1, keepdims=True)
        cen = x - mean
        var = jnp.mean(cen * cen, axis=-1, keepdims=True)
        return cen * lax.rsqrt(var + eps) * g + b

    # ---- sublayer 1: pre-norm multi-head self-attention (bias=False) ----
    s2 = layer_norm(src, g1_ref[...], beta1_ref[...])        # (M, E) f32
    v_bf = s2.astype(bf16)                                    # value input
    if pos_ref is None:
        qk_bf = v_bf                                          # q = k = src2
    else:
        qk_bf = ((s2.reshape(NB, L, E) + pos_ref[...])        # q = k = src2 + pos
                 .reshape(M, E).astype(bf16))

    # TODO(synk): for long sequences add a flash-style KV-tiled (online-softmax) variant so the
    # fused layer stays under v7x's 64 MiB VMEM instead of materializing full (L, L) scores.
    attn = jnp.zeros((M, E), f32)
    for h in range(H):                                        # static unroll over heads
        # per-head projections over ALL batched rows; weights indexed on the free leading axis,
        # 1/sqrt(Dh) already folded into wq.
        q_h = jnp.dot(qk_bf, wq_ref[h], preferred_element_type=f32).astype(bf16)  # (M, Dh)
        k_h = jnp.dot(qk_bf, wk_ref[h], preferred_element_type=f32).astype(bf16)  # (M, Dh)
        v_h = jnp.dot(v_bf, wv_ref[h], preferred_element_type=f32).astype(bf16)   # (M, Dh)

        ctx_blocks = []
        for b in range(NB):                                   # attention never mixes batch rows
            rs = slice(b * L, (b + 1) * L)                    # sublane (row) slice -> cheap
            s = lax.dot_general(q_h[rs], k_h[rs], (((1,), (1,)), ((), ())),
                                preferred_element_type=f32)   # (L, L) f32
            s = s - jnp.max(s, axis=-1, keepdims=True)
            p = jnp.exp(s)
            p = p * pl.reciprocal(jnp.sum(p, axis=-1, keepdims=True), approx=True)
            ctx_blocks.append(jnp.dot(p.astype(bf16), v_h[rs],
                                      preferred_element_type=f32))                # (L, Dh)
        ctx = ctx_blocks[0] if NB == 1 else jnp.concatenate(ctx_blocks, axis=0)   # (M, Dh)

        # fold out-projection into the head loop: no head concat / lane-axis slicing.
        attn = attn + jnp.dot(ctx.astype(bf16), wo_ref[h], preferred_element_type=f32)

    x1 = src + attn                                           # residual; dropout1 = identity

    # ---- sublayer 2: pre-norm feed-forward ----
    s2 = layer_norm(x1, g2_ref[...], beta2_ref[...])
    hmid = jnp.dot(s2.astype(bf16), w1_ref[...], preferred_element_type=f32) + b1_ref[...]
    hmid = jnp.maximum(hmid, 0.0)                             # relu; dropout = identity
    y = jnp.dot(hmid.astype(bf16), w2_ref[...], preferred_element_type=f32) + b2_ref[...]
    out_ref[...] = (x1 + y).reshape(NB, L, E).astype(out_ref.dtype)   # residual; dropout2 = id.


# --------------------------- parameter prep (one-time) ---------------------------

def prepare_params(raw, num_heads):
    """Pre-transpose weights, split Q/K/V/O per head along the leading axis, fold the
    1/sqrt(head_dim) scale into Wq, and cast matmul weights to bfloat16."""
    E = raw['out_proj_w'].shape[0]
    F = raw['w1'].shape[0]
    H = num_heads
    assert E % H == 0
    Dh = E // H
    scale = 1.0 / math.sqrt(Dh)
    f32, bf16 = jnp.float32, jnp.bfloat16

    wq_t = (raw['in_proj_w'][:E] * scale).T                   # (E, E), scale folded
    wk_t = raw['in_proj_w'][E:2 * E].T                        # (E, E)
    wv_t = raw['in_proj_w'][2 * E:].T                         # (E, E)
    wo_t = raw['out_proj_w'].T                                # (E, E)

    def split_heads_cols(w_t):                                # (E, E) -> (H, E, Dh)
        return jnp.transpose(w_t.reshape(E, H, Dh), (1, 0, 2))

    return {
        'wq_h': split_heads_cols(wq_t).astype(bf16),          # (H, E, Dh)
        'wk_h': split_heads_cols(wk_t).astype(bf16),          # (H, E, Dh)
        'wv_h': split_heads_cols(wv_t).astype(bf16),          # (H, E, Dh)
        'wo_h': wo_t.reshape(H, Dh, E).astype(bf16),          # (H, Dh, E)
        'w1_t': raw['w1'].T.astype(bf16),                     # (E, F)
        'b1': raw['b1'].reshape(1, F).astype(f32),
        'w2_t': raw['w2'].T.astype(bf16),                     # (F, E)
        'b2': raw['b2'].reshape(1, E).astype(f32),
        'ln1_g': raw['ln1_g'].reshape(1, E).astype(f32),
        'ln1_b': raw['ln1_b'].reshape(1, E).astype(f32),
        'ln2_g': raw['ln2_g'].reshape(1, E).astype(f32),
        'ln2_b': raw['ln2_b'].reshape(1, E).astype(f32),
    }


def _pick_batch_block(N, L, rows_target=256):
    """Largest divisor of N such that one grid step has ~rows_target GEMM rows
    (128+ for v5e, 256 for v6e/v7x), while keeping >=2 grid steps when N allows so a
    megacore (v7x) can shard the 'parallel' axis across both TensorCores."""
    divisors = [d for d in range(1, N + 1) if N % d == 0]
    if N * L <= rows_target:
        half = [d for d in divisors if N // d >= 2]
        return max(half) if half else 1
    fits = [d for d in divisors if d * L <= rows_target]
    return max(fits) if fits else 1


# --------------------------- wrappers ---------------------------

def transformer_encoder_layer(src_nle, prep, *, num_heads, pos=None, eps=1e-5,
                              batch_block=None, rows_target=256):
    """Fused encoder layer.  src_nle: batch-major (N, L, E) float32.  Returns (N, L, E)."""
    N, L, E = src_nle.shape
    if batch_block is None:
        batch_block = _pick_batch_block(N, L, rows_target)
    NB = batch_block
    assert N % NB == 0, (N, NB)
    use_pos = pos is not None

    inputs = [src_nle.astype(jnp.float32)]
    in_specs = [pl.BlockSpec((NB, L, E), lambda n: (n, 0, 0))]

    if use_pos:
        pos_arr = jnp.asarray(pos, jnp.float32)
        assert pos_arr.size == L * E, f"pos must have {L}x{E} elements, got {pos_arr.shape}"
        inputs.append(pos_arr.reshape(1, L, E))               # single copy, VMEM resident
        in_specs.append(pl.BlockSpec((1, L, E), lambda n: (0, 0, 0)))

    for name in ('wq_h', 'wk_h', 'wv_h', 'wo_h', 'w1_t', 'b1', 'w2_t', 'b2',
                 'ln1_g', 'ln1_b', 'ln2_g', 'ln2_b'):
        w = prep[name]
        inputs.append(w)
        in_specs.append(pl.BlockSpec(w.shape, lambda n, _nd=w.ndim: (0,) * _nd))

    out = pl.pallas_call(
        functools.partial(_encoder_layer_kernel, num_heads=num_heads, eps=eps,
                          use_pos=use_pos),
        out_shape=jax.ShapeDtypeStruct((N, L, E), jnp.float32),
        grid=(N // NB,),
        in_specs=in_specs,
        out_specs=pl.BlockSpec((NB, L, E), lambda n: (n, 0, 0)),
        compiler_params=pltpu.CompilerParams(
            dimension_semantics=("parallel",),
            vmem_limit_bytes=32 * 1024 * 1024),
    )(*inputs)
    return out


def transformer_encoder_layer_torch_layout(src_lne, prep, *, num_heads, pos=None, eps=1e-5):
    """Adapter for torch's (L, N, E) layout.  Prefer the batch-major entry point above to
    avoid the two HBM-round-trip transposes."""
    out = transformer_encoder_layer(jnp.transpose(src_lne, (1, 0, 2)), prep,
                                    num_heads=num_heads, pos=pos, eps=eps)
    return jnp.transpose(out, (1, 0, 2))


# --------------------------- pure-JAX reference (validation) ---------------------------

def reference_layer(src, raw, num_heads, pos=None, eps=1e-5):
    """Batch-major (N, L, E) f32 reference matching the PyTorch module in eval mode."""
    N, L, E = src.shape
    H = num_heads
    Dh = E // H

    def ln(x, g, b):
        mean = x.mean(-1, keepdims=True)
        var = ((x - mean) ** 2).mean(-1, keepdims=True)
        return (x - mean) / jnp.sqrt(var + eps) * g + b

    with jax.default_matmul_precision('highest'):
        s2 = ln(src, raw['ln1_g'], raw['ln1_b'])
        qk = s2 if pos is None else s2 + jnp.asarray(pos, jnp.float32).reshape(1, L, E)
        wq, wk, wv = raw['in_proj_w'][:E], raw['in_proj_w'][E:2 * E], raw['in_proj_w'][2 * E:]
        q, k, v = qk @ wq.T, qk @ wk.T, s2 @ wv.T             # (N, L, E)

        def split(t):                                          # (N, L, E) -> (N, H, L, Dh)
            return t.reshape(N, L, H, Dh).transpose(0, 2, 1, 3)

        qh = split(q) * (1.0 / math.sqrt(Dh))
        kh, vh = split(k), split(v)
        s = jnp.einsum('nhqd,nhkd->nhqk', qh, kh)
        p = jax.nn.softmax(s, axis=-1)
        oh = jnp.einsum('nhqk,nhkd->nhqd', p, vh)
        o = oh.transpose(0, 2, 1, 3).reshape(N, L, E)
        x1 = src + o @ raw['out_proj_w'].T
        s2 = ln(x1, raw['ln2_g'], raw['ln2_b'])
        h = jax.nn.relu(s2 @ raw['w1'].T + raw['b1'])
        return x1 + (h @ raw['w2'].T + raw['b2'])


# --------------------------- main ---------------------------

if __name__ == "__main__":
    D_MODEL, NHEAD, DIM_FF = 64, 4, 128
    SEQ, BATCH = 16, 2

    keys = jax.random.split(jax.random.PRNGKey(0), 16)
    raw = {
        'in_proj_w':  0.1 * jax.random.normal(keys[0], (3 * D_MODEL, D_MODEL), jnp.float32),
        'out_proj_w': 0.1 * jax.random.normal(keys[1], (D_MODEL, D_MODEL), jnp.float32),
        'w1': 0.1 * jax.random.normal(keys[2], (DIM_FF, D_MODEL), jnp.float32),
        'b1': 0.1 * jax.random.normal(keys[3], (DIM_FF,), jnp.float32),
        'b2': 0.1 * jax.random.normal(keys[5], (D_MODEL,), jnp.float32),
        'w2': 0.1 * jax.random.normal(keys[4], (D_MODEL, DIM_FF), jnp.float32),
        'ln1_g': 1.0 + 0.05 * jax.random.normal(keys[6], (D_MODEL,), jnp.float32),
        'ln1_b': 0.05 * jax.random.normal(keys[7], (D_MODEL,), jnp.float32),
        'ln2_g': 1.0 + 0.05 * jax.random.normal(keys[8], (D_MODEL,), jnp.float32),
        'ln2_b': 0.05 * jax.random.normal(keys[9], (D_MODEL,), jnp.float32),
    }
    src = jax.random.normal(keys[10], (BATCH, SEQ, D_MODEL), jnp.float32)   # batch-major (N, L, E)
    pos = 0.1 * jax.random.normal(keys[11], (SEQ, D_MODEL), jnp.float32)

    prep = prepare_params(raw, NHEAD)   # one-time: bf16, per-head split, scale folded

    # pos=None path (module default).
    fwd = jax.jit(functools.partial(transformer_encoder_layer, num_heads=NHEAD))
    out = fwd(src, prep)
    jax.block_until_ready(out)
    assert out.shape == (BATCH, SEQ, D_MODEL), out.shape
    assert bool(jnp.all(jnp.isfinite(out)))
    ref = reference_layer(src, raw, NHEAD)
    err = float(jnp.max(jnp.abs(out - ref)))
    assert err < 1e-1, f"pos=None: max abs error vs f32 reference: {err}"

    # pos path (q = k = norm1(src) + pos).
    fwd_pos = jax.jit(functools.partial(transformer_encoder_layer, num_heads=NHEAD, pos=pos))
    out_p = fwd_pos(src, prep)
    jax.block_until_ready(out_p)
    assert bool(jnp.all(jnp.isfinite(out_p)))
    ref_p = reference_layer(src, raw, NHEAD, pos=pos)
    err_p = float(jnp.max(jnp.abs(out_p - ref_p)))
    assert err_p < 1e-1, f"pos: max abs error vs f32 reference: {err_p}"

    print("KERNEL_OK")
</pallas_src>

<mosaic_0001>
module attributes {stable_mosaic.version = 11 : i64} {
  func.func @_encoder_layer_kernel(%arg0: i32, %arg1: memref<1x16x64xf32, #tpu.memory_space<vmem>>, %arg2: memref<4x64x16xbf16, #tpu.memory_space<vmem>>, %arg3: memref<4x64x16xbf16, #tpu.memory_space<vmem>>, %arg4: memref<4x64x16xbf16, #tpu.memory_space<vmem>>, %arg5: memref<4x16x64xbf16, #tpu.memory_space<vmem>>, %arg6: memref<64x128xbf16, #tpu.memory_space<vmem>>, %arg7: memref<1x128xf32, #tpu.memory_space<vmem>>, %arg8: memref<128x64xbf16, #tpu.memory_space<vmem>>, %arg9: memref<1x64xf32, #tpu.memory_space<vmem>>, %arg10: memref<1x64xf32, #tpu.memory_space<vmem>>, %arg11: memref<1x64xf32, #tpu.memory_space<vmem>>, %arg12: memref<1x64xf32, #tpu.memory_space<vmem>>, %arg13: memref<1x64xf32, #tpu.memory_space<vmem>>, %arg14: memref<1x16x64xf32, #tpu.memory_space<vmem>>) attributes {dimension_semantics = [#tpu.dimension_semantics<parallel>], iteration_bounds = array<i64: 2>, scalar_prefetch = 0 : i64, scratch_operands = 0 : i64, tpu.core_type = #tpu.core_type<tc>, window_params = [{transform_indices = @transform_0, window_bounds = array<i64: 1, 16, 64>}, {pipeline_mode = #tpu.pipeline_mode<synchronous>, transform_indices = @transform_1, window_bounds = array<i64: 4, 64, 16>}, {pipeline_mode = #tpu.pipeline_mode<synchronous>, transform_indices = @transform_2, window_bounds = array<i64: 4, 64, 16>}, {pipeline_mode = #tpu.pipeline_mode<synchronous>, transform_indices = @transform_3, window_bounds = array<i64: 4, 64, 16>}, {pipeline_mode = #tpu.pipeline_mode<synchronous>, transform_indices = @transform_4, window_bounds = array<i64: 4, 16, 64>}, {pipeline_mode = #tpu.pipeline_mode<synchronous>, transform_indices = @transform_5, window_bounds = array<i64: 64, 128>}, {pipeline_mode = #tpu.pipeline_mode<synchronous>, transform_indices = @transform_6, window_bounds = array<i64: 1, 128>}, {pipeline_mode = #tpu.pipeline_mode<synchronous>, transform_indices = @transform_7, window_bounds = array<i64: 128, 64>}, {pipeline_mode = #tpu.pipeline_mode<synchronous>, transform_indices = @transform_8, window_bounds = array<i64: 1, 64>}, {pipeline_mode = #tpu.pipeline_mode<synchronous>, transform_indices = @transform_9, window_bounds = array<i64: 1, 64>}, {pipeline_mode = #tpu.pipeline_mode<synchronous>, transform_indices = @transform_10, window_bounds = array<i64: 1, 64>}, {pipeline_mode = #tpu.pipeline_mode<synchronous>, transform_indices = @transform_11, window_bounds = array<i64: 1, 64>}, {pipeline_mode = #tpu.pipeline_mode<synchronous>, transform_indices = @transform_12, window_bounds = array<i64: 1, 64>}, {transform_indices = @transform_13, window_bounds = array<i64: 1, 16, 64>}]} {
    %c0 = arith.constant 0 : index
    %c0_0 = arith.constant 0 : index
    %c0_1 = arith.constant 0 : index
    %0 = vector.load %arg1[%c0, %c0_0, %c0_1] : memref<1x16x64xf32, #tpu.memory_space<vmem>>, vector<1x16x64xf32>
    %1 = vector.shape_cast %0 : vector<1x16x64xf32> to vector<16x64xf32>
    %c0_2 = arith.constant 0 : index
    %c0_3 = arith.constant 0 : index
    %2 = vector.load %arg10[%c0_2, %c0_3] : memref<1x64xf32, #tpu.memory_space<vmem>>, vector<1x64xf32>
    %c0_4 = arith.constant 0 : index
    %c0_5 = arith.constant 0 : index
    %3 = vector.load %arg11[%c0_4, %c0_5] : memref<1x64xf32, #tpu.memory_space<vmem>>, vector<1x64xf32>
    %cst = arith.constant dense<0.000000e+00> : vector<16xf32>
    %4 = vector.multi_reduction <add>, %1, %cst [1] : vector<16x64xf32> to vector<16xf32>
    %5 = vector.shape_cast %4 : vector<16xf32> to vector<16x1xf32>
    %cst_6 = arith.constant 6.400000e+01 : f32
    %6 = vector.broadcast %cst_6 : f32 to vector<16x1xf32>
    %7 = arith.divf %5, %6 : vector<16x1xf32>
    %8 = vector.broadcast %7 : vector<16x1xf32> to vector<16x64xf32>
    %9 = arith.subf %1, %8 : vector<16x64xf32>
    %10 = arith.mulf %9, %9 : vector<16x64xf32>
    %cst_7 = arith.constant dense<0.000000e+00> : vector<16xf32>
    %11 = vector.multi_reduction <add>, %10, %cst_7 [1] : vector<16x64xf32> to vector<16xf32>
    %12 = vector.shape_cast %11 : vector<16xf32> to vector<16x1xf32>
    %cst_8 = arith.constant 6.400000e+01 : f32
    %13 = vector.broadcast %cst_8 : f32 to vector<16x1xf32>
    %14 = arith.divf %12, %13 : vector<16x1xf32>
    %cst_9 = arith.constant 9.99999974E-6 : f32
    %15 = vector.broadcast %cst_9 : f32 to vector<16x1xf32>
    %16 = arith.addf %14, %15 : vector<16x1xf32>
    %17 = math.rsqrt %16 : vector<16x1xf32>
    %18 = vector.broadcast %17 : vector<16x1xf32> to vector<16x64xf32>
    %19 = arith.mulf %9, %18 : vector<16x64xf32>
    %20 = vector.broadcast %2 : vector<1x64xf32> to vector<16x64xf32>
    %21 = arith.mulf %19, %20 : vector<16x64xf32>
    %22 = vector.broadcast %3 : vector<1x64xf32> to vector<16x64xf32>
    %23 = arith.addf %21, %22 : vector<16x64xf32>
    %24 = arith.truncf %23 : vector<16x64xf32> to vector<16x64xbf16>
    %cst_10 = arith.constant 0.000000e+00 : f32
    %25 = vector.broadcast %cst_10 : f32 to vector<16x64xf32>
    %c0_11 = arith.constant 0 : index
    %c0_12 = arith.constant 0 : index
    %c0_13 = arith.constant 0 : index
    %26 = vector.load %arg2[%c0_11, %c0_12, %c0_13] : memref<4x64x16xbf16, #tpu.memory_space<vmem>>, vector<1x64x16xbf16>
    %27 = vector.shape_cast %26 : vector<1x64x16xbf16> to vector<64x16xbf16>
    %cst_14 = arith.constant dense<0.000000e+00> : vector<16x16xf32>
    %28 = tpu.matmul %24, %27, %cst_14 {dimension_numbers = #tpu.dot_dimension_numbers<[1], [0], [0], [1], [0, 0, 1, 1], [], []>} : vector<16x64xbf16>, vector<64x16xbf16>, vector<16x16xf32> -> vector<16x16xf32>
    %29 = arith.truncf %28 : vector<16x16xf32> to vector<16x16xbf16>
    %c0_15 = arith.constant 0 : index
    %c0_16 = arith.constant 0 : index
    %c0_17 = arith.constant 0 : index
    %30 = vector.load %arg3[%c0_15, %c0_16, %c0_17] : memref<4x64x16xbf16, #tpu.memory_space<vmem>>, vector<1x64x16xbf16>
    %31 = vector.shape_cast %30 : vector<1x64x16xbf16> to vector<64x16xbf16>
    %cst_18 = arith.constant dense<0.000000e+00> : vector<16x16xf32>
    %32 = tpu.matmul %24, %31, %cst_18 {dimension_numbers = #tpu.dot_dimension_numbers<[1], [0], [0], [1], [0, 0, 1, 1], [], []>} : vector<16x64xbf16>, vector<64x16xbf16>, vector<16x16xf32> -> vector<16x16xf32>
    %33 = arith.truncf %32 : vector<16x16xf32> to vector<16x16xbf16>
    %c0_19 = arith.constant 0 : index
    %c0_20 = arith.constant 0 : index
    %c0_21 = arith.constant 0 : index
    %34 = vector.load %arg4[%c0_19, %c0_20, %c0_21] : memref<4x64x16xbf16, #tpu.memory_space<vmem>>, vector<1x64x16xbf16>
    %35 = vector.shape_cast %34 : vector<1x64x16xbf16> to vector<64x16xbf16>
    %cst_22 = arith.constant dense<0.000000e+00> : vector<16x16xf32>
    %36 = tpu.matmul %24, %35, %cst_22 {dimension_numbers = #tpu.dot_dimension_numbers<[1], [0], [0], [1], [0, 0, 1, 1], [], []>} : vector<16x64xbf16>, vector<64x16xbf16>, vector<16x16xf32> -> vector<16x16xf32>
    %37 = arith.truncf %36 : vector<16x16xf32> to vector<16x16xbf16>
    %cst_23 = arith.constant dense<0.000000e+00> : vector<16x16xf32>
    %38 = tpu.matmul %29, %33, %cst_23 {dimension_numbers = #tpu.dot_dimension_numbers<[1], [1], [0], [0], [0, 0, 1, 0], [], []>} : vector<16x16xbf16>, vector<16x16xbf16>, vector<16x16xf32> -> vector<16x16xf32>
    %cst_24 = arith.constant dense<0xFF800000> : vector<16xf32>
    %39 = vector.multi_reduction <maximumf>, %38, %cst_24 [1] : vector<16x16xf32> to vector<16xf32>
    %40 = vector.shape_cast %39 : vector<16xf32> to vector<16x1xf32>
    %41 = vector.broadcast %40 : vector<16x1xf32> to vector<16x16xf32>
    %42 = arith.subf %38, %41 : vector<16x16xf32>
    %43 = math.exp %42 : vector<16x16xf32>
    %cst_25 = arith.constant dense<0.000000e+00> : vector<16xf32>
    %44 = vector.multi_reduction <add>, %43, %cst_25 [1] : vector<16x16xf32> to vector<16xf32>
    %45 = vector.shape_cast %44 : vector<16xf32> to vector<16x1xf32>
    %46 = tpu.reciprocal %45 {approx = true} : vector<16x1xf32> -> vector<16x1xf32>
    %47 = vector.broadcast %46 : vector<16x1xf32> to vector<16x16xf32>
    %48 = arith.mulf %43, %47 : vector<16x16xf32>
    %49 = arith.truncf %48 : vector<16x16xf32> to vector<16x16xbf16>
    %cst_26 = arith.constant dense<0.000000e+00> : vector<16x16xf32>
    %50 = tpu.matmul %49, %37, %cst_26 {dimension_numbers = #tpu.dot_dimension_numbers<[1], [0], [0], [1], [0, 0, 1, 1], [], []>} : vector<16x16xbf16>, vector<16x16xbf16>, vector<16x16xf32> -> vector<16x16xf32>
    %51 = arith.truncf %50 : vector<16x16xf32> to vector<16x16xbf16>
    %c0_27 = arith.constant 0 : index
    %c0_28 = arith.constant 0 : index
    %c0_29 = arith.constant 0 : index
    %52 = vector.load %arg5[%c0_27, %c0_28, %c0_29] : memref<4x16x64xbf16, #tpu.memory_space<vmem>>, vector<1x16x64xbf16>
    %53 = vector.shape_cast %52 : vector<1x16x64xbf16> to vector<16x64xbf16>
    %cst_30 = arith.constant dense<0.000000e+00> : vector<16x64xf32>
    %54 = tpu.matmul %51, %53, %cst_30 {dimension_numbers = #tpu.dot_dimension_numbers<[1], [0], [0], [1], [0, 0, 1, 1], [], []>} : vector<16x16xbf16>, vector<16x64xbf16>, vector<16x64xf32> -> vector<16x64xf32>
    %55 = arith.addf %25, %54 : vector<16x64xf32>
    %c1 = arith.constant 1 : index
    %c0_31 = arith.constant 0 : index
    %c0_32 = arith.constant 0 : index
    %56 = vector.load %arg2[%c1, %c0_31, %c0_32] : memref<4x64x16xbf16, #tpu.memory_space<vmem>>, vector<1x64x16xbf16>
    %57 = vector.shape_cast %56 : vector<1x64x16xbf16> to vector<64x16xbf16>
    %cst_33 = arith.constant dense<0.000000e+00> : vector<16x16xf32>
    %58 = tpu.matmul %24, %57, %cst_33 {dimension_numbers = #tpu.dot_dimension_numbers<[1], [0], [0], [1], [0, 0, 1, 1], [], []>} : vector<16x64xbf16>, vector<64x16xbf16>, vector<16x16xf32> -> vector<16x16xf32>
    %59 = arith.truncf %58 : vector<16x16xf32> to vector<16x16xbf16>
    %c1_34 = arith.constant 1 : index
    %c0_35 = arith.constant 0 : index
    %c0_36 = arith.constant 0 : index
    %60 = vector.load %arg3[%c1_34, %c0_35, %c0_36] : memref<4x64x16xbf16, #tpu.memory_space<vmem>>, vector<1x64x16xbf16>
    %61 = vector.shape_cast %60 : vector<1x64x16xbf16> to vector<64x16xbf16>
    %cst_37 = arith.constant dense<0.000000e+00> : vector<16x16xf32>
    %62 = tpu.matmul %24, %61, %cst_37 {dimension_numbers = #tpu.dot_dimension_numbers<[1], [0], [0], [1], [0, 0, 1, 1], [], []>} : vector<16x64xbf16>, vector<64x16xbf16>, vector<16x16xf32> -> vector<16x16xf32>
    %63 = arith.truncf %62 : vector<16x16xf32> to vector<16x16xbf16>
    %c1_38 = arith.constant 1 : index
    %c0_39 = arith.constant 0 : index
    %c0_40 = arith.constant 0 : index
    %64 = vector.load %arg4[%c1_38, %c0_39, %c0_40] : memref<4x64x16xbf16, #tpu.memory_space<vmem>>, vector<1x64x16xbf16>
    %65 = vector.shape_cast %64 : vector<1x64x16xbf16> to vector<64x16xbf16>
    %cst_41 = arith.constant dense<0.000000e+00> : vector<16x16xf32>
    %66 = tpu.matmul %24, %65, %cst_41 {dimension_numbers = #tpu.dot_dimension_numbers<[1], [0], [0], [1], [0, 0, 1, 1], [], []>} : vector<16x64xbf16>, vector<64x16xbf16>, vector<16x16xf32> -> vector<16x16xf32>
    %67 = arith.truncf %66 : vector<16x16xf32> to vector<16x16xbf16>
    %cst_42 = arith.constant dense<0.000000e+00> : vector<16x16xf32>
    %68 = tpu.matmul %59, %63, %cst_42 {dimension_numbers = #tpu.dot_dimension_numbers<[1], [1], [0], [0], [0, 0, 1, 0], [], []>} : vector<16x16xbf16>, vector<16x16xbf16>, vector<16x16xf32> -> vector<16x16xf32>
    %cst_43 = arith.constant dense<0xFF800000> : vector<16xf32>
    %69 = vector.multi_reduction <maximumf>, %68, %cst_43 [1] : vector<16x16xf32> to vector<16xf32>
    %70 = vector.shape_cast %69 : vector<16xf32> to vector<16x1xf32>
    %71 = vector.broadcast %70 : vector<16x1xf32> to vector<16x16xf32>
    %72 = arith.subf %68, %71 : vector<16x16xf32>
    %73 = math.exp %72 : vector<16x16xf32>
    %cst_44 = arith.constant dense<0.000000e+00> : vector<16xf32>
    %74 = vector.multi_reduction <add>, %73, %cst_44 [1] : vector<16x16xf32> to vector<16xf32>
    %75 = vector.shape_cast %74 : vector<16xf32> to vector<16x1xf32>
    %76 = tpu.reciprocal %75 {approx = true} : vector<16x1xf32> -> vector<16x1xf32>
    %77 = vector.broadcast %76 : vector<16x1xf32> to vector<16x16xf32>
    %78 = arith.mulf %73, %77 : vector<16x16xf32>
    %79 = arith.truncf %78 : vector<16x16xf32> to vector<16x16xbf16>
    %cst_45 = arith.constant dense<0.000000e+00> : vector<16x16xf32>
    %80 = tpu.matmul %79, %67, %cst_45 {dimension_numbers = #tpu.dot_dimension_numbers<[1], [0], [0], [1], [0, 0, 1, 1], [], []>} : vector<16x16xbf16>, vector<16x16xbf16>, vector<16x16xf32> -> vector<16x16xf32>
    %81 = arith.truncf %80 : vector<16x16xf32> to vector<16x16xbf16>
    %c1_46 = arith.constant 1 : index
    %c0_47 = arith.constant 0 : index
    %c0_48 = arith.constant 0 : index
    %82 = vector.load %arg5[%c1_46, %c0_47, %c0_48] : memref<4x16x64xbf16, #tpu.memory_space<vmem>>, vector<1x16x64xbf16>
    %83 = vector.shape_cast %82 : vector<1x16x64xbf16> to vector<16x64xbf16>
    %cst_49 = arith.constant dense<0.000000e+00> : vector<16x64xf32>
    %84 = tpu.matmul %81, %83, %cst_49 {dimension_numbers = #tpu.dot_dimension_numbers<[1], [0], [0], [1], [0, 0, 1, 1], [], []>} : vector<16x16xbf16>, vector<16x64xbf16>, vector<16x64xf32> -> vector<16x64xf32>
    %85 = arith.addf %55, %84 : vector<16x64xf32>
    %c2 = arith.constant 2 : index
    %c0_50 = arith.constant 0 : index
    %c0_51 = arith.constant 0 : index
    %86 = vector.load %arg2[%c2, %c0_50, %c0_51] : memref<4x64x16xbf16, #tpu.memory_space<vmem>>, vector<1x64x16xbf16>
    %87 = vector.shape_cast %86 : vector<1x64x16xbf16> to vector<64x16xbf16>
    %cst_52 = arith.constant dense<0.000000e+00> : vector<16x16xf32>
    %88 = tpu.matmul %24, %87, %cst_52 {dimension_numbers = #tpu.dot_dimension_numbers<[1], [0], [0], [1], [0, 0, 1, 1], [], []>} : vector<16x64xbf16>, vector<64x16xbf16>, vector<16x16xf32> -> vector<16x16xf32>
    %89 = arith.truncf %88 : vector<16x16xf32> to vector<16x16xbf16>
    %c2_53 = arith.constant 2 : index
    %c0_54 = arith.constant 0 : index
    %c0_55 = arith.constant 0 : index
    %90 = vector.load %arg3[%c2_53, %c0_54, %c0_55] : memref<4x64x16xbf16, #tpu.memory_space<vmem>>, vector<1x64x16xbf16>
    %91 = vector.shape_cast %90 : vector<1x64x16xbf16> to vector<64x16xbf16>
    %cst_56 = arith.constant dense<0.000000e+00> : vector<16x16xf32>
    %92 = tpu.matmul %24, %91, %cst_56 {dimension_numbers = #tpu.dot_dimension_numbers<[1], [0], [0], [1], [0, 0, 1, 1], [], []>} : vector<16x64xbf16>, vector<64x16xbf16>, vector<16x16xf32> -> vector<16x16xf32>
    %93 = arith.truncf %92 : vector<16x16xf32> to vector<16x16xbf16>
    %c2_57 = arith.constant 2 : index
    %c0_58 = arith.constant 0 : index
    %c0_59 = arith.constant 0 : index
    %94 = vector.load %arg4[%c2_57, %c0_58, %c0_59] : memref<4x64x16xbf16, #tpu.memory_space<vmem>>, vector<1x64x16xbf16>
    %95 = vector.shape_cast %94 : vector<1x64x16xbf16> to vector<64x16xbf16>
    %cst_60 = arith.constant dense<0.000000e+00> : vector<16x16xf32>
    %96 = tpu.matmul %24, %95, %cst_60 {dimension_numbers = #tpu.dot_dimension_numbers<[1], [0], [0], [1], [0, 0, 1, 1], [], []>} : vector<16x64xbf16>, vector<64x16xbf16>, vector<16x16xf32> -> vector<16x16xf32>
    %97 = arith.truncf %96 : vector<16x16xf32> to vector<16x16xbf16>
    %cst_61 = arith.constant dense<0.000000e+00> : vector<16x16xf32>
    %98 = tpu.matmul %89, %93, %cst_61 {dimension_numbers = #tpu.dot_dimension_numbers<[1], [1], [0], [0], [0, 0, 1, 0], [], []>} : vector<16x16xbf16>, vector<16x16xbf16>, vector<16x16xf32> -> vector<16x16xf32>
    %cst_62 = arith.constant dense<0xFF800000> : vector<16xf32>
    %99 = vector.multi_reduction <maximumf>, %98, %cst_62 [1] : vector<16x16xf32> to vector<16xf32>
    %100 = vector.shape_cast %99 : vector<16xf32> to vector<16x1xf32>
    %101 = vector.broadcast %100 : vector<16x1xf32> to vector<16x16xf32>
    %102 = arith.subf %98, %101 : vector<16x16xf32>
    %103 = math.exp %102 : vector<16x16xf32>
    %cst_63 = arith.constant dense<0.000000e+00> : vector<16xf32>
    %104 = vector.multi_reduction <add>, %103, %cst_63 [1] : vector<16x16xf32> to vector<16xf32>
    %105 = vector.shape_cast %104 : vector<16xf32> to vector<16x1xf32>
    %106 = tpu.reciprocal %105 {approx = true} : vector<16x1xf32> -> vector<16x1xf32>
    %107 = vector.broadcast %106 : vector<16x1xf32> to vector<16x16xf32>
    %108 = arith.mulf %103, %107 : vector<16x16xf32>
    %109 = arith.truncf %108 : vector<16x16xf32> to vector<16x16xbf16>
    %cst_64 = arith.constant dense<0.000000e+00> : vector<16x16xf32>
    %110 = tpu.matmul %109, %97, %cst_64 {dimension_numbers = #tpu.dot_dimension_numbers<[1], [0], [0], [1], [0, 0, 1, 1], [], []>} : vector<16x16xbf16>, vector<16x16xbf16>, vector<16x16xf32> -> vector<16x16xf32>
    %111 = arith.truncf %110 : vector<16x16xf32> to vector<16x16xbf16>
    %c2_65 = arith.constant 2 : index
    %c0_66 = arith.constant 0 : index
    %c0_67 = arith.constant 0 : index
    %112 = vector.load %arg5[%c2_65, %c0_66, %c0_67] : memref<4x16x64xbf16, #tpu.memory_space<vmem>>, vector<1x16x64xbf16>
    %113 = vector.shape_cast %112 : vector<1x16x64xbf16> to vector<16x64xbf16>
    %cst_68 = arith.constant dense<0.000000e+00> : vector<16x64xf32>
    %114 = tpu.matmul %111, %113, %cst_68 {dimension_numbers = #tpu.dot_dimension_numbers<[1], [0], [0], [1], [0, 0, 1, 1], [], []>} : vector<16x16xbf16>, vector<16x64xbf16>, vector<16x64xf32> -> vector<16x64xf32>
    %115 = arith.addf %85, %114 : vector<16x64xf32>
    %c3 = arith.constant 3 : index
    %c0_69 = arith.constant 0 : index
    %c0_70 = arith.constant 0 : index
    %116 = vector.load %arg2[%c3, %c0_69, %c0_70] : memref<4x64x16xbf16, #tpu.memory_space<vmem>>, vector<1x64x16xbf16>
    %117 = vector.shape_cast %116 : vector<1x64x16xbf16> to vector<64x16xbf16>
    %cst_71 = arith.constant dense<0.000000e+00> : vector<16x16xf32>
    %118 = tpu.matmul %24, %117, %cst_71 {dimension_numbers = #tpu.dot_dimension_numbers<[1], [0], [0], [1], [0, 0, 1, 1], [], []>} : vector<16x64xbf16>, vector<64x16xbf16>, vector<16x16xf32> -> vector<16x16xf32>
    %119 = arith.truncf %118 : vector<16x16xf32> to vector<16x16xbf16>
    %c3_72 = arith.constant 3 : index
    %c0_73 = arith.constant 0 : index
    %c0_74 = arith.constant 0 : index
    %120 = vector.load %arg3[%c3_72, %c0_73, %c0_74] : memref<4x64x16xbf16, #tpu.memory_space<vmem>>, vector<1x64x16xbf16>
    %121 = vector.shape_cast %120 : vector<1x64x16xbf16> to vector<64x16xbf16>
    %cst_75 = arith.constant dense<0.000000e+00> : vector<16x16xf32>
    %122 = tpu.matmul %24, %121, %cst_75 {dimension_numbers = #tpu.dot_dimension_numbers<[1], [0], [0], [1], [0, 0, 1, 1], [], []>} : vector<16x64xbf16>, vector<64x16xbf16>, vector<16x16xf32> -> vector<16x16xf32>
    %123 = arith.truncf %122 : vector<16x16xf32> to vector<16x16xbf16>
    %c3_76 = arith.constant 3 : index
    %c0_77 = arith.constant 0 : index
    %c0_78 = arith.constant 0 : index
    %124 = vector.load %arg4[%c3_76, %c0_77, %c0_78] : memref<4x64x16xbf16, #tpu.memory_space<vmem>>, vector<1x64x16xbf16>
    %125 = vector.shape_cast %124 : vector<1x64x16xbf16> to vector<64x16xbf16>
    %cst_79 = arith.constant dense<0.000000e+00> : vector<16x16xf32>
    %126 = tpu.matmul %24, %125, %cst_79 {dimension_numbers = #tpu.dot_dimension_numbers<[1], [0], [0], [1], [0, 0, 1, 1], [], []>} : vector<16x64xbf16>, vector<64x16xbf16>, vector<16x16xf32> -> vector<16x16xf32>
    %127 = arith.truncf %126 : vector<16x16xf32> to vector<16x16xbf16>
    %cst_80 = arith.constant dense<0.000000e+00> : vector<16x16xf32>
    %128 = tpu.matmul %119, %123, %cst_80 {dimension_numbers = #tpu.dot_dimension_numbers<[1], [1], [0], [0], [0, 0, 1, 0], [], []>} : vector<16x16xbf16>, vector<16x16xbf16>, vector<16x16xf32> -> vector<16x16xf32>
    %cst_81 = arith.constant dense<0xFF800000> : vector<16xf32>
    %129 = vector.multi_reduction <maximumf>, %128, %cst_81 [1] : vector<16x16xf32> to vector<16xf32>
    %130 = vector.shape_cast %129 : vector<16xf32> to vector<16x1xf32>
    %131 = vector.broadcast %130 : vector<16x1xf32> to vector<16x16xf32>
    %132 = arith.subf %128, %131 : vector<16x16xf32>
    %133 = math.exp %132 : vector<16x16xf32>
    %cst_82 = arith.constant dense<0.000000e+00> : vector<16xf32>
    %134 = vector.multi_reduction <add>, %133, %cst_82 [1] : vector<16x16xf32> to vector<16xf32>
    %135 = vector.shape_cast %134 : vector<16xf32> to vector<16x1xf32>
    %136 = tpu.reciprocal %135 {approx = true} : vector<16x1xf32> -> vector<16x1xf32>
    %137 = vector.broadcast %136 : vector<16x1xf32> to vector<16x16xf32>
    %138 = arith.mulf %133, %137 : vector<16x16xf32>
    %139 = arith.truncf %138 : vector<16x16xf32> to vector<16x16xbf16>
    %cst_83 = arith.constant dense<0.000000e+00> : vector<16x16xf32>
    %140 = tpu.matmul %139, %127, %cst_83 {dimension_numbers = #tpu.dot_dimension_numbers<[1], [0], [0], [1], [0, 0, 1, 1], [], []>} : vector<16x16xbf16>, vector<16x16xbf16>, vector<16x16xf32> -> vector<16x16xf32>
    %141 = arith.truncf %140 : vector<16x16xf32> to vector<16x16xbf16>
    %c3_84 = arith.constant 3 : index
    %c0_85 = arith.constant 0 : index
    %c0_86 = arith.constant 0 : index
    %142 = vector.load %arg5[%c3_84, %c0_85, %c0_86] : memref<4x16x64xbf16, #tpu.memory_space<vmem>>, vector<1x16x64xbf16>
    %143 = vector.shape_cast %142 : vector<1x16x64xbf16> to vector<16x64xbf16>
    %cst_87 = arith.constant dense<0.000000e+00> : vector<16x64xf32>
    %144 = tpu.matmul %141, %143, %cst_87 {dimension_numbers = #tpu.dot_dimension_numbers<[1], [0], [0], [1], [0, 0, 1, 1], [], []>} : vector<16x16xbf16>, vector<16x64xbf16>, vector<16x64xf32> -> vector<16x64xf32>
    %145 = arith.addf %115, %144 : vector<16x64xf32>
    %146 = arith.addf %1, %145 : vector<16x64xf32>
    %c0_88 = arith.constant 0 : index
    %c0_89 = arith.constant 0 : index
    %147 = vector.load %arg12[%c0_88, %c0_89] : memref<1x64xf32, #tpu.memory_space<vmem>>, vector<1x64xf32>
    %c0_90 = arith.constant 0 : index
    %c0_91 = arith.constant 0 : index
    %148 = vector.load %arg13[%c0_90, %c0_91] : memref<1x64xf32, #tpu.memory_space<vmem>>, vector<1x64xf32>
    %cst_92 = arith.constant dense<0.000000e+00> : vector<16xf32>
    %149 = vector.multi_reduction <add>, %146, %cst_92 [1] : vector<16x64xf32> to vector<16xf32>
    %150 = vector.shape_cast %149 : vector<16xf32> to vector<16x1xf32>
    %cst_93 = arith.constant 6.400000e+01 : f32
    %151 = vector.broadcast %cst_93 : f32 to vector<16x1xf32>
    %152 = arith.divf %150, %151 : vector<16x1xf32>
    %153 = vector.broadcast %152 : vector<16x1xf32> to vector<16x64xf32>
    %154 = arith.subf %146, %153 : vector<16x64xf32>
    %155 = arith.mulf %154, %154 : vector<16x64xf32>
    %cst_94 = arith.constant dense<0.000000e+00> : vector<16xf32>
    %156 = vector.multi_reduction <add>, %155, %cst_94 [1] : vector<16x64xf32> to vector<16xf32>
    %157 = vector.shape_cast %156 : vector<16xf32> to vector<16x1xf32>
    %cst_95 = arith.constant 6.400000e+01 : f32
    %158 = vector.broadcast %cst_95 : f32 to vector<16x1xf32>
    %159 = arith.divf %157, %158 : vector<16x1xf32>
    %cst_96 = arith.constant 9.99999974E-6 : f32
    %160 = vector.broadcast %cst_96 : f32 to vector<16x1xf32>
    %161 = arith.addf %159, %160 : vector<16x1xf32>
    %162 = math.rsqrt %161 : vector<16x1xf32>
    %163 = vector.broadcast %162 : vector<16x1xf32> to vector<16x64xf32>
    %164 = arith.mulf %154, %163 : vector<16x64xf32>
    %165 = vector.broadcast %147 : vector<1x64xf32> to vector<16x64xf32>
    %166 = arith.mulf %164, %165 : vector<16x64xf32>
    %167 = vector.broadcast %148 : vector<1x64xf32> to vector<16x64xf32>
    %168 = arith.addf %166, %167 : vector<16x64xf32>
    %169 = arith.truncf %168 : vector<16x64xf32> to vector<16x64xbf16>
    %c0_97 = arith.constant 0 : index
    %c0_98 = arith.constant 0 : index
    %170 = vector.load %arg6[%c0_97, %c0_98] : memref<64x128xbf16, #tpu.memory_space<vmem>>, vector<64x128xbf16>
    %cst_99 = arith.constant dense<0.000000e+00> : vector<16x128xf32>
    %171 = tpu.matmul %169, %170, %cst_99 {dimension_numbers = #tpu.dot_dimension_numbers<[1], [0], [0], [1], [0, 0, 1, 1], [], []>} : vector<16x64xbf16>, vector<64x128xbf16>, vector<16x128xf32> -> vector<16x128xf32>
    %c0_100 = arith.constant 0 : index
    %c0_101 = arith.constant 0 : index
    %172 = vector.load %arg7[%c0_100, %c0_101] : memref<1x128xf32, #tpu.memory_space<vmem>>, vector<1x128xf32>
    %173 = vector.broadcast %172 : vector<1x128xf32> to vector<16x128xf32>
    %174 = arith.addf %171, %173 : vector<16x128xf32>
    %cst_102 = arith.constant 0.000000e+00 : f32
    %175 = vector.broadcast %cst_102 : f32 to vector<16x128xf32>
    %176 = arith.maximumf %174, %175 : vector<16x128xf32>
    %177 = arith.truncf %176 : vector<16x128xf32> to vector<16x128xbf16>
    %c0_103 = arith.constant 0 : index
    %c0_104 = arith.constant 0 : index
    %178 = vector.load %arg8[%c0_103, %c0_104] : memref<128x64xbf16, #tpu.memory_space<vmem>>, vector<128x64xbf16>
    %cst_105 = arith.constant dense<0.000000e+00> : vector<16x64xf32>
    %179 = tpu.matmul %177, %178, %cst_105 {dimension_numbers = #tpu.dot_dimension_numbers<[1], [0], [0], [1], [0, 0, 1, 1], [], []>} : vector<16x128xbf16>, vector<128x64xbf16>, vector<16x64xf32> -> vector<16x64xf32>
    %c0_106 = arith.constant 0 : index
    %c0_107 = arith.constant 0 : index
    %180 = vector.load %arg9[%c0_106, %c0_107] : memref<1x64xf32, #tpu.memory_space<vmem>>, vector<1x64xf32>
    %181 = vector.broadcast %180 : vector<1x64xf32> to vector<16x64xf32>
    %182 = arith.addf %179, %181 : vector<16x64xf32>
    %183 = arith.addf %146, %182 : vector<16x64xf32>
    %184 = vector.shape_cast %183 : vector<16x64xf32> to vector<1x16x64xf32>
    %c0_108 = arith.constant 0 : index
    %c0_109 = arith.constant 0 : index
    %c0_110 = arith.constant 0 : index
    %185 = vector.load %arg14[%c0_108, %c0_109, %c0_110] : memref<1x16x64xf32, #tpu.memory_space<vmem>>, vector<1x16x64xf32>
    tpu.vector_store %arg14[%c0_108, %c0_109, %c0_110], %184 {strides = array<i32>} : memref<1x16x64xf32, #tpu.memory_space<vmem>>, vector<1x16x64xf32>,
    return
  }
  func.func @transform_0(%arg0: i32) -> (i32, i32, i32) {
    %c0_i32 = arith.constant 0 : i32
    %c0_i32_0 = arith.constant 0 : i32
    %c0_i32_1 = arith.constant 0 : i32
    return %arg0, %c0_i32, %c0_i32_0 : i32, i32, i32
  }
  func.func @transform_1(%arg0: i32) -> (i32, i32, i32) {
    %c0_i32 = arith.constant 0 : i32
    %c0_i32_0 = arith.constant 0 : i32
    %c0_i32_1 = arith.constant 0 : i32
    %c0_i32_2 = arith.constant 0 : i32
    return %c0_i32, %c0_i32_0, %c0_i32_1 : i32, i32, i32
  }
  func.func @transform_2(%arg0: i32) -> (i32, i32, i32) {
    %c0_i32 = arith.constant 0 : i32
    %c0_i32_0 = arith.constant 0 : i32
    %c0_i32_1 = arith.constant 0 : i32
    %c0_i32_2 = arith.constant 0 : i32
    return %c0_i32, %c0_i32_0, %c0_i32_1 : i32, i32, i32
  }
  func.func @transform_3(%arg0: i32) -> (i32, i32, i32) {
    %c0_i32 = arith.constant 0 : i32
    %c0_i32_0 = arith.constant 0 : i32
    %c0_i32_1 = arith.constant 0 : i32
    %c0_i32_2 = arith.constant 0 : i32
    return %c0_i32, %c0_i32_0, %c0_i32_1 : i32, i32, i32
  }
  func.func @transform_4(%arg0: i32) -> (i32, i32, i32) {
    %c0_i32 = arith.constant 0 : i32
    %c0_i32_0 = arith.constant 0 : i32
    %c0_i32_1 = arith.constant 0 : i32
    %c0_i32_2 = arith.constant 0 : i32
    return %c0_i32, %c0_i32_0, %c0_i32_1 : i32, i32, i32
  }
  func.func @transform_5(%arg0: i32) -> (i32, i32) {
    %c0_i32 = arith.constant 0 : i32
    %c0_i32_0 = arith.constant 0 : i32
    %c0_i32_1 = arith.constant 0 : i32
    return %c0_i32, %c0_i32_0 : i32, i32
  }
  func.func @transform_6(%arg0: i32) -> (i32, i32) {
    %c0_i32 = arith.constant 0 : i32
    %c0_i32_0 = arith.constant 0 : i32
    %c0_i32_1 = arith.constant 0 : i32
    return %c0_i32, %c0_i32_0 : i32, i32
  }
  func.func @transform_7(%arg0: i32) -> (i32, i32) {
    %c0_i32 = arith.constant 0 : i32
    %c0_i32_0 = arith.constant 0 : i32
    %c0_i32_1 = arith.constant 0 : i32
    return %c0_i32, %c0_i32_0 : i32, i32
  }
  func.func @transform_8(%arg0: i32) -> (i32, i32) {
    %c0_i32 = arith.constant 0 : i32
    %c0_i32_0 = arith.constant 0 : i32
    %c0_i32_1 = arith.constant 0 : i32
    return %c0_i32, %c0_i32_0 : i32, i32
  }
  func.func @transform_9(%arg0: i32) -> (i32, i32) {
    %c0_i32 = arith.constant 0 : i32
    %c0_i32_0 = arith.constant 0 : i32
    %c0_i32_1 = arith.constant 0 : i32
    return %c0_i32, %c0_i32_0 : i32, i32
  }
  func.func @transform_10(%arg0: i32) -> (i32, i32) {
    %c0_i32 = arith.constant 0 : i32
    %c0_i32_0 = arith.constant 0 : i32
    %c0_i32_1 = arith.constant 0 : i32
    return %c0_i32, %c0_i32_0 : i32, i32
  }
  func.func @transform_11(%arg0: i32) -> (i32, i32) {
    %c0_i32 = arith.constant 0 : i32
    %c0_i32_0 = arith.constant 0 : i32
    %c0_i32_1 = arith.constant 0 : i32
    return %c0_i32, %c0_i32_0 : i32, i32
  }
  func.func @transform_12(%arg0: i32) -> (i32, i32) {
    %c0_i32 = arith.constant 0 : i32
    %c0_i32_0 = arith.constant 0 : i32
    %c0_i32_1 = arith.constant 0 : i32
    return %c0_i32, %c0_i32_0 : i32, i32
  }
  func.func @transform_13(%arg0: i32) -> (i32, i32, i32) {
    %c0_i32 = arith.constant 0 : i32
    %c0_i32_0 = arith.constant 0 : i32
    %c0_i32_1 = arith.constant 0 : i32
    return %arg0, %c0_i32, %c0_i32_0 : i32, i32, i32
  }
}

</mosaic_0001>

<llo_original>
// kernel: transformer_encoder_layer.1
$region0: #{transformer_encoder_layer.1}
  #allocation0 [shape = 'u32[]', space=smem, size = 0x4, offset = 0x4, fixed_abs, tag = 'smem constant byte address 0x4 - core index']
  #allocation1 [shape = 'u32[144,128]{1,0:T(1,128)}', space=vmem, size = 0x12000, scoped, tag = 'internal scratch']
  %s0 = inlined_call_operand.vmem [shape: f32[2,16,64], index: 0, kind: input, shape index: {}]
  %s1 = inlined_call_operand.vmem [shape: bf16[4,64,16], index: 1, kind: input, shape index: {}]
  %s2 = inlined_call_operand.vmem [shape: bf16[4,64,16], index: 2, kind: input, shape index: {}]
  %s3 = inlined_call_operand.vmem [shape: bf16[4,64,16], index: 3, kind: input, shape index: {}]
  %s4 = inlined_call_operand.vmem [shape: bf16[4,16,64], index: 4, kind: input, shape index: {}]
  %s5 = inlined_call_operand.vmem [shape: bf16[64,128], index: 5, kind: input, shape index: {}]
  %s6 = inlined_call_operand.vmem [shape: f32[1,128], index: 6, kind: input, shape index: {}]
  %s7 = inlined_call_operand.vmem [shape: bf16[128,64], index: 7, kind: input, shape index: {}]
  %s8 = inlined_call_operand.vmem [shape: f32[1,64], index: 8, kind: input, shape index: {}]
  %s9 = inlined_call_operand.vmem [shape: f32[1,64], index: 9, kind: input, shape index: {}]
  %s10 = inlined_call_operand.vmem [shape: f32[1,64], index: 10, kind: input, shape index: {}]
  %s11 = inlined_call_operand.vmem [shape: f32[1,64], index: 11, kind: input, shape index: {}]
  %s12 = inlined_call_operand.vmem [shape: f32[1,64], index: 12, kind: input, shape index: {}]
  %s13 = inlined_call_operand.hbm [shape: f32[2,16,64], index: 13, kind: output, shape index: {}]
  %s14 = sld [smem:[#allocation0]]
  $region85: #{transformer_encoder_layer.1} parent=0
    _
  %s16 = ssub.s32 1, %s14
  %s17 = scalar_select 0, %s16, %s14
  $region1: #{transformer_encoder_layer.1} parent=0
    #allocation2 [shape = 'u8[16384]{0}', space=vmem, size = 0x4000, scoped, tag = 'output window, operand 0']
    #allocation3 [shape = 's32[2]{0}', space=sflag, size = 0x8, scoped, tag = 'scoped memory for transformer_encoder_layer.1']
    %18 = vsyncpa [#allocation3], 0
    %s19 = scalar_lea.sflag [#allocation3], 1
    %20 = vsyncpa %s19, 0
    loop: start=0, step=1, limit=4
    $region2: #{transformer_encoder_layer.1} parent=1 // loop_pre_header
      _
    $region3: #{transformer_encoder_layer.1} parent=1 // loop_header
      %s22 = sphi 0, %s26
      %p23 = scmp.ge.s32.totalorder %s22, 4
      %s32 = sphi 0, %s34
      %s35 = sphi 0, %s32
      %s36 = sphi 0, %s35
      %s52 = sphi 0, %s36
      %s56 = sphi 0, %s56
      %s58 = sphi 0, %s56
      %s59 = sphi 0, %s58
      %s73 = sphi 0, %s59
      %s77 = sphi 0, %s77
      %s79 = sphi 0, %s77
      %s80 = sphi 0, %s79
      %s94 = sphi 0, %s80
      %s98 = sphi 0, %s98
      %s100 = sphi 0, %s98
      %s101 = sphi 0, %s100
      %s115 = sphi 0, %s101
      %s119 = sphi 0, %s119
      %s121 = sphi 0, %s119
      %s122 = sphi 0, %s121
      %s136 = sphi 0, %s122
      %s140 = sphi 0, %s140
      %s142 = sphi 0, %s140
      %s143 = sphi 0, %s142
      %s157 = sphi 0, %s143
      %s161 = sphi 0, %s161
      %s163 = sphi 0, %s161
      %s164 = sphi 0, %s163
      %s178 = sphi 0, %s164
      %s182 = sphi 0, %s182
      %s184 = sphi 0, %s182
      %s185 = sphi 0, %s184
      %s199 = sphi 0, %s185
      %s203 = sphi 0, %s203
      %s205 = sphi 0, %s203
      %s206 = sphi 0, %s205
      %s220 = sphi 0, %s206
      %s224 = sphi 0, %s224
      %s226 = sphi 0, %s224
      %s227 = sphi 0, %s226
      %s241 = sphi 0, %s227
      %s245 = sphi 0, %s245
      %s247 = sphi 0, %s245
      %s248 = sphi 0, %s247
      %s262 = sphi 0, %s248
      %s266 = sphi 0, %s266
      %s268 = sphi 0, %s266
      %s269 = sphi 0, %s268
      %s283 = sphi 0, %s269
      %s287 = sphi 0, %s287
      %s289 = sphi 0, %s287
      %s290 = sphi 0, %s289
      %s304 = sphi 0, %s290
      %s310 = sphi 0, %s312
      %s313 = sphi 0, %s310
      %s314 = sphi 0, %s313
      %s330 = sphi 0, %s314
    $region4: #{transformer_encoder_layer.1} parent=1 // loop_header_branch
      %25 = sbr.rel (%p23) target = $region8
    $region5: #{transformer_encoder_layer.1} parent=1 // loop_body
      %s27 = ssub.s32 %s22, 1
      %s28 = ssub.s32 %s22, 2
      %s29 = sadd.s32 %s22, 1
      %s30 = ssub.s32 %s22, %s29
      %p31 = scmp.eq.s32.totalorder %s30, 0
      %s33 = sadd.s32 %s32, 1
      %s34 = scalar_select %p31, %s32, %s33
      %p37 = pneg %p31
      %p38 = scmp.eq.s32.totalorder %s22, 1
      %p39 = por %p37, %p38
      %p40 = scmp.ne.s32.totalorder %s32, %s35
      %p41 = scmp.eq.s32.totalorder %s22, 0
      %p42 = por %p40, %p41
      %p43 = scmp.ne.s32.totalorder %s32, %s35
      %p44 = scmp.eq.s32.totalorder %s27, 1
      %p45 = por %p43, %p44
      %p46 = scmp.ne.s32.totalorder %s35, %s36
      %p47 = scmp.eq.s32.totalorder %s27, 0
      %p48 = por %p46, %p47
      %p49 = scmp.ne.s32.totalorder %s35, %s36
      %p50 = scmp.eq.s32.totalorder %s28, 1
      %p51 = por %p49, %p50
      %p53 = scmp.ne.s32.totalorder %s36, %s52
      %p54 = scmp.eq.s32.totalorder %s28, 0
      %p55 = por %p53, %p54
      %s57 = sadd.s32 %s56, 1
      %p60 = scmp.eq.s32.totalorder %s22, 1
      %p61 = scmp.ne.s32.totalorder %s56, %s58
      %p62 = scmp.eq.s32.totalorder %s22, 0
      %p63 = por %p61, %p62
      %p64 = scmp.ne.s32.totalorder %s56, %s58
      %p65 = scmp.eq.s32.totalorder %s27, 1
      %p66 = por %p64, %p65
      %p67 = scmp.ne.s32.totalorder %s58, %s59
      %p68 = scmp.eq.s32.totalorder %s27, 0
      %p69 = por %p67, %p68
      %p70 = scmp.ne.s32.totalorder %s58, %s59
      %p71 = scmp.eq.s32.totalorder %s28, 1
      %p72 = por %p70, %p71
      %p74 = scmp.ne.s32.totalorder %s59, %s73
      %p75 = scmp.eq.s32.totalorder %s28, 0
      %p76 = por %p74, %p75
      %s78 = sadd.s32 %s77, 1
      %p81 = scmp.eq.s32.totalorder %s22, 1
      %p82 = scmp.ne.s32.totalorder %s77, %s79
      %p83 = scmp.eq.s32.totalorder %s22, 0
      %p84 = por %p82, %p83
      %p85 = scmp.ne.s32.totalorder %s77, %s79
      %p86 = scmp.eq.s32.totalorder %s27, 1
      %p87 = por %p85, %p86
      %p88 = scmp.ne.s32.totalorder %s79, %s80
      %p89 = scmp.eq.s32.totalorder %s27, 0
      %p90 = por %p88, %p89
      %p91 = scmp.ne.s32.totalorder %s79, %s80
      %p92 = scmp.eq.s32.totalorder %s28, 1
      %p93 = por %p91, %p92
      %p95 = scmp.ne.s32.totalorder %s80, %s94
      %p96 = scmp.eq.s32.totalorder %s28, 0
      %p97 = por %p95, %p96
      %s99 = sadd.s32 %s98, 1
      %p102 = scmp.eq.s32.totalorder %s22, 1
      %p103 = scmp.ne.s32.totalorder %s98, %s100
      %p104 = scmp.eq.s32.totalorder %s22, 0
      %p105 = por %p103, %p104
      %p106 = scmp.ne.s32.totalorder %s98, %s100
      %p107 = scmp.eq.s32.totalorder %s27, 1
      %p108 = por %p106, %p107
      %p109 = scmp.ne.s32.totalorder %s100, %s101
      %p110 = scmp.eq.s32.totalorder %s27, 0
      %p111 = por %p109, %p110
      %p112 = scmp.ne.s32.totalorder %s100, %s101
      %p113 = scmp.eq.s32.totalorder %s28, 1
      %p114 = por %p112, %p113
      %p116 = scmp.ne.s32.totalorder %s101, %s115
      %p117 = scmp.eq.s32.totalorder %s28, 0
      %p118 = por %p116, %p117
      %s120 = sadd.s32 %s119, 1
      %p123 = scmp.eq.s32.totalorder %s22, 1
      %p124 = scmp.ne.s32.totalorder %s119, %s121
      %p125 = scmp.eq.s32.totalorder %s22, 0
      %p126 = por %p124, %p125
      %p127 = scmp.ne.s32.totalorder %s119, %s121
      %p128 = scmp.eq.s32.totalorder %s27, 1
      %p129 = por %p127, %p128
      %p130 = scmp.ne.s32.totalorder %s121, %s122
      %p131 = scmp.eq.s32.totalorder %s27, 0
      %p132 = por %p130, %p131
      %p133 = scmp.ne.s32.totalorder %s121, %s122
      %p134 = scmp.eq.s32.totalorder %s28, 1
      %p135 = por %p133, %p134
      %p137 = scmp.ne.s32.totalorder %s122, %s136
      %p138 = scmp.eq.s32.totalorder %s28, 0
      %p139 = por %p137, %p138
      %s141 = sadd.s32 %s140, 1
      %p144 = scmp.eq.s32.totalorder %s22, 1
      %p145 = scmp.ne.s32.totalorder %s140, %s142
      %p146 = scmp.eq.s32.totalorder %s22, 0
      %p147 = por %p145, %p146
      %p148 = scmp.ne.s32.totalorder %s140, %s142
      %p149 = scmp.eq.s32.totalorder %s27, 1
      %p150 = por %p148, %p149
      %p151 = scmp.ne.s32.totalorder %s142, %s143
      %p152 = scmp.eq.s32.totalorder %s27, 0
      %p153 = por %p151, %p152
      %p154 = scmp.ne.s32.totalorder %s142, %s143
      %p155 = scmp.eq.s32.totalorder %s28, 1
      %p156 = por %p154, %p155
      %p158 = scmp.ne.s32.totalorder %s143, %s157
      %p159 = scmp.eq.s32.totalorder %s28, 0
      %p160 = por %p158, %p159
      %s162 = sadd.s32 %s161, 1
      %p165 = scmp.eq.s32.totalorder %s22, 1
      %p166 = scmp.ne.s32.totalorder %s161, %s163
      %p167 = scmp.eq.s32.totalorder %s22, 0
      %p168 = por %p166, %p167
      %p169 = scmp.ne.s32.totalorder %s161, %s163
      %p170 = scmp.eq.s32.totalorder %s27, 1
      %p171 = por %p169, %p170
      %p172 = scmp.ne.s32.totalorder %s163, %s164
      %p173 = scmp.eq.s32.totalorder %s27, 0
      %p174 = por %p172, %p173
      %p175 = scmp.ne.s32.totalorder %s163, %s164
      %p176 = scmp.eq.s32.totalorder %s28, 1
      %p177 = por %p175, %p176
      %p179 = scmp.ne.s32.totalorder %s164, %s178
      %p180 = scmp.eq.s32.totalorder %s28, 0
      %p181 = por %p179, %p180
      %s183 = sadd.s32 %s182, 1
      %p186 = scmp.eq.s32.totalorder %s22, 1
      %p187 = scmp.ne.s32.totalorder %s182, %s184
      %p188 = scmp.eq.s32.totalorder %s22, 0
      %p189 = por %p187, %p188
      %p190 = scmp.ne.s32.totalorder %s182, %s184
      %p191 = scmp.eq.s32.totalorder %s27, 1
      %p192 = por %p190, %p191
      %p193 = scmp.ne.s32.totalorder %s184, %s185
      %p194 = scmp.eq.s32.totalorder %s27, 0
      %p195 = por %p193, %p194
      %p196 = scmp.ne.s32.totalorder %s184, %s185
      %p197 = scmp.eq.s32.totalorder %s28, 1
      %p198 = por %p196, %p197
      %p200 = scmp.ne.s32.totalorder %s185, %s199
      %p201 = scmp.eq.s32.totalorder %s28, 0
      %p202 = por %p200, %p201
      %s204 = sadd.s32 %s203, 1
      %p207 = scmp.eq.s32.totalorder %s22, 1
      %p208 = scmp.ne.s32.totalorder %s203, %s205
      %p209 = scmp.eq.s32.totalorder %s22, 0
      %p210 = por %p208, %p209
      %p211 = scmp.ne.s32.totalorder %s203, %s205
      %p212 = scmp.eq.s32.totalorder %s27, 1
      %p213 = por %p211, %p212
      %p214 = scmp.ne.s32.totalorder %s205, %s206
      %p215 = scmp.eq.s32.totalorder %s27, 0
      %p216 = por %p214, %p215
      %p217 = scmp.ne.s32.totalorder %s205, %s206
      %p218 = scmp.eq.s32.totalorder %s28, 1
      %p219 = por %p217, %p218
      %p221 = scmp.ne.s32.totalorder %s206, %s220
      %p222 = scmp.eq.s32.totalorder %s28, 0
      %p223 = por %p221, %p222
      %s225 = sadd.s32 %s224, 1
      %p228 = scmp.eq.s32.totalorder %s22, 1
      %p229 = scmp.ne.s32.totalorder %s224, %s226
      %p230 = scmp.eq.s32.totalorder %s22, 0
      %p231 = por %p229, %p230
      %p232 = scmp.ne.s32.totalorder %s224, %s226
      %p233 = scmp.eq.s32.totalorder %s27, 1
      %p234 = por %p232, %p233
      %p235 = scmp.ne.s32.totalorder %s226, %s227
      %p236 = scmp.eq.s32.totalorder %s27, 0
      %p237 = por %p235, %p236
      %p238 = scmp.ne.s32.totalorder %s226, %s227
      %p239 = scmp.eq.s32.totalorder %s28, 1
      %p240 = por %p238, %p239
      %p242 = scmp.ne.s32.totalorder %s227, %s241
      %p243 = scmp.eq.s32.totalorder %s28, 0
      %p244 = por %p242, %p243
      %s246 = sadd.s32 %s245, 1
      %p249 = scmp.eq.s32.totalorder %s22, 1
      %p250 = scmp.ne.s32.totalorder %s245, %s247
      %p251 = scmp.eq.s32.totalorder %s22, 0
      %p252 = por %p250, %p251
      %p253 = scmp.ne.s32.totalorder %s245, %s247
      %p254 = scmp.eq.s32.totalorder %s27, 1
      %p255 = por %p253, %p254
      %p256 = scmp.ne.s32.totalorder %s247, %s248
      %p257 = scmp.eq.s32.totalorder %s27, 0
      %p258 = por %p256, %p257
      %p259 = scmp.ne.s32.totalorder %s247, %s248
      %p260 = scmp.eq.s32.totalorder %s28, 1
      %p261 = por %p259, %p260
      %p263 = scmp.ne.s32.totalorder %s248, %s262
      %p264 = scmp.eq.s32.totalorder %s28, 0
      %p265 = por %p263, %p264
      %s267 = sadd.s32 %s266, 1
      %p270 = scmp.eq.s32.totalorder %s22, 1
      %p271 = scmp.ne.s32.totalorder %s266, %s268
      %p272 = scmp.eq.s32.totalorder %s22, 0
      %p273 = por %p271, %p272
      %p274 = scmp.ne.s32.totalorder %s266, %s268
      %p275 = scmp.eq.s32.totalorder %s27, 1
      %p276 = por %p274, %p275
      %p277 = scmp.ne.s32.totalorder %s268, %s269
      %p278 = scmp.eq.s32.totalorder %s27, 0
      %p279 = por %p277, %p278
      %p280 = scmp.ne.s32.totalorder %s268, %s269
      %p281 = scmp.eq.s32.totalorder %s28, 1
      %p282 = por %p280, %p281
      %p284 = scmp.ne.s32.totalorder %s269, %s283
      %p285 = scmp.eq.s32.totalorder %s28, 0
      %p286 = por %p284, %p285
      %s288 = sadd.s32 %s287, 1
      %p291 = scmp.eq.s32.totalorder %s22, 1
      %p292 = scmp.ne.s32.totalorder %s287, %s289
      %p293 = scmp.eq.s32.totalorder %s22, 0
      %p294 = por %p292, %p293
      %p295 = scmp.ne.s32.totalorder %s287, %s289
      %p296 = scmp.eq.s32.totalorder %s27, 1
      %p297 = por %p295, %p296
      %p298 = scmp.ne.s32.totalorder %s289, %s290
      %p299 = scmp.eq.s32.totalorder %s27, 0
      %p300 = por %p298, %p299
      %p301 = scmp.ne.s32.totalorder %s289, %s290
      %p302 = scmp.eq.s32.totalorder %s28, 1
      %p303 = por %p301, %p302
      %p305 = scmp.ne.s32.totalorder %s290, %s304
      %p306 = scmp.eq.s32.totalorder %s28, 0
      %p307 = por %p305, %p306
      %s308 = ssub.s32 %s22, %s29
      %p309 = scmp.eq.s32.totalorder %s308, 0
      %s311 = sadd.s32 %s310, 1
      %s312 = scalar_select %p309, %s310, %s311
      %p315 = pneg %p309
      %p316 = scmp.eq.s32.totalorder %s22, 1
      %p317 = por %p315, %p316
      %p318 = scmp.ne.s32.totalorder %s310, %s313
      %p319 = scmp.eq.s32.totalorder %s22, 0
      %p320 = por %p318, %p319
      %p321 = scmp.ne.s32.totalorder %s310, %s313
      %p322 = scmp.eq.s32.totalorder %s27, 1
      %p323 = por %p321, %p322
      %p324 = scmp.ne.s32.totalorder %s313, %s314
      %p325 = scmp.eq.s32.totalorder %s27, 0
      %p326 = por %p324, %p325
      %p327 = scmp.ne.s32.totalorder %s313, %s314
      %p328 = scmp.eq.s32.totalorder %s28, 1
      %p329 = por %p327, %p328
      %p331 = scmp.ne.s32.totalorder %s314, %s330
      %p332 = scmp.eq.s32.totalorder %s28, 0
      %p333 = por %p331, %p332
      %p334 = scmp.le.s32.totalorder 1, %s22
      %p335 = scmp.lt.s32.totalorder %s22, 3
      %p336 = pnand %p334, %p335
      %p337 = pneg %p336
      // Predicated region
      $region9: #{transformer_encoder_layer.1} parent=5 // pred_check
        _
      $region10: #{transformer_encoder_layer.1} parent=5 // pred_check_branch
        %339 = sbr.rel (%p336) target = $region12
      $region11: #{transformer_encoder_layer.1} parent=5 // pred_region
        %s340 = ssub.s32 %s22, 1
        // Predicated region
        $region13: #{transformer_encoder_layer.1} parent=11 // pred_check
          %p341 = pneg %p69
        $region14: #{transformer_encoder_layer.1} parent=11 // pred_check_branch
          %343 = sbr.rel (%p341) target = $region16
        $region15: #{transformer_encoder_layer.1} parent=11 // pred_region
          _
        $region16: #{transformer_encoder_layer.1} parent=11 // pred_fallthru
          _
        // Predicated region
        $region17: #{transformer_encoder_layer.1} parent=11 // pred_check
          %p344 = pneg %p90
        $region18: #{transformer_encoder_layer.1} parent=11 // pred_check_branch
          %346 = sbr.rel (%p344) target = $region20
        $region19: #{transformer_encoder_layer.1} parent=11 // pred_region
          _
        $region20: #{transformer_encoder_layer.1} parent=11 // pred_fallthru
          _
        // Predicated region
        $region21: #{transformer_encoder_layer.1} parent=11 // pred_check
          %p347 = pneg %p111
        $region22: #{transformer_encoder_layer.1} parent=11 // pred_check_branch
          %349 = sbr.rel (%p347) target = $region24
        $region23: #{transformer_encoder_layer.1} parent=11 // pred_region
          _
        $region24: #{transformer_encoder_layer.1} parent=11 // pred_fallthru
          _
        // Predicated region
        $region25: #{transformer_encoder_layer.1} parent=11 // pred_check
          %p350 = pneg %p132
        $region26: #{transformer_encoder_layer.1} parent=11 // pred_check_branch
          %352 = sbr.rel (%p350) target = $region28
        $region27: #{transformer_encoder_layer.1} parent=11 // pred_region
          _
        $region28: #{transformer_encoder_layer.1} parent=11 // pred_fallthru
          _
        // Predicated region
        $region29: #{transformer_encoder_layer.1} parent=11 // pred_check
          %p353 = pneg %p153
        $region30: #{transformer_encoder_layer.1} parent=11 // pred_check_branch
          %355 = sbr.rel (%p353) target = $region32
        $region31: #{transformer_encoder_layer.1} parent=11 // pred_region
          _
        $region32: #{transformer_encoder_layer.1} parent=11 // pred_fallthru
          _
        // Predicated region
        $region33: #{transformer_encoder_layer.1} parent=11 // pred_check
          %p356 = pneg %p174
        $region34: #{transformer_encoder_layer.1} parent=11 // pred_check_branch
          %358 = sbr.rel (%p356) target = $region36
        $region35: #{transformer_encoder_layer.1} parent=11 // pred_region
          _
        $region36: #{transformer_encoder_layer.1} parent=11 // pred_fallthru
          _
        // Predicated region
        $region37: #{transformer_encoder_layer.1} parent=11 // pred_check
          %p359 = pneg %p195
        $region38: #{transformer_encoder_layer.1} parent=11 // pred_check_branch
          %361 = sbr.rel (%p359) target = $region40
        $region39: #{transformer_encoder_layer.1} parent=11 // pred_region
          _
        $region40: #{transformer_encoder_layer.1} parent=11 // pred_fallthru
          _
        // Predicated region
        $region41: #{transformer_encoder_layer.1} parent=11 // pred_check
          %p362 = pneg %p216
        $region42: #{transformer_encoder_layer.1} parent=11 // pred_check_branch
          %364 = sbr.rel (%p362) target = $region44
        $region43: #{transformer_encoder_layer.1} parent=11 // pred_region
          _
        $region44: #{transformer_encoder_layer.1} parent=11 // pred_fallthru
          _
        // Predicated region
        $region45: #{transformer_encoder_layer.1} parent=11 // pred_check
          %p365 = pneg %p237
        $region46: #{transformer_encoder_layer.1} parent=11 // pred_check_branch
          %367 = sbr.rel (%p365) target = $region48
        $region47: #{transformer_encoder_layer.1} parent=11 // pred_region
          _
        $region48: #{transformer_encoder_layer.1} parent=11 // pred_fallthru
          _
        // Predicated region
        $region49: #{transformer_encoder_layer.1} parent=11 // pred_check
          %p368 = pneg %p258
        $region50: #{transformer_encoder_layer.1} parent=11 // pred_check_branch
          %370 = sbr.rel (%p368) target = $region52
        $region51: #{transformer_encoder_layer.1} parent=11 // pred_region
          _
        $region52: #{transformer_encoder_layer.1} parent=11 // pred_fallthru
          _
        // Predicated region
        $region53: #{transformer_encoder_layer.1} parent=11 // pred_check
          %p371 = pneg %p279
        $region54: #{transformer_encoder_layer.1} parent=11 // pred_check_branch
          %373 = sbr.rel (%p371) target = $region56
        $region55: #{transformer_encoder_layer.1} parent=11 // pred_region
          _
        $region56: #{transformer_encoder_layer.1} parent=11 // pred_fallthru
          _
        // Predicated region
        $region57: #{transformer_encoder_layer.1} parent=11 // pred_check
          %p374 = pneg %p300
        $region58: #{transformer_encoder_layer.1} parent=11 // pred_check_branch
          %376 = sbr.rel (%p374) target = $region60
        $region59: #{transformer_encoder_layer.1} parent=11 // pred_region
          _
        $region60: #{transformer_encoder_layer.1} parent=11 // pred_fallthru
          _
      $region12: #{transformer_encoder_layer.1} parent=5 // pred_fallthru
        _
      %p377 = scmp.lt.s32.totalorder %s22, 2
      // Predicated region
      $region61: #{transformer_encoder_layer.1} parent=5 // pred_check
        %p378 = pneg %p377
      $region62: #{transformer_encoder_layer.1} parent=5 // pred_check_branch
        %380 = sbr.rel (%p378) target = $region64
      $region63: #{transformer_encoder_layer.1} parent=5 // pred_region
        // Predicated region
        $region65: #{transformer_encoder_layer.1} parent=63 // pred_check
          %p381 = pneg %p42
        $region66: #{transformer_encoder_layer.1} parent=63 // pred_check_branch
          %383 = sbr.rel (%p381) target = $region68
        $region67: #{transformer_encoder_layer.1} parent=63 // pred_region
          %p384 = scmp.lt.s32.totalorder %s22, 1
          %s385 = scalar_select %p384, %s22, 1
          %s386 = smul.addr %s385, 2
          %s387 = smul.addr %s386, 8
          %s388 = scalar_lea.vmem %s0, %s387
        $region68: #{transformer_encoder_layer.1} parent=63 // pred_fallthru
          _
      $region64: #{transformer_encoder_layer.1} parent=5 // pred_fallthru
        _
      %p389 = scmp.le.s32.totalorder 1, %s22
      %p390 = scmp.lt.s32.totalorder %s22, 3
      %p391 = pnand %p389, %p390
      %p392 = pneg %p391
      // Predicated region
      $region69: #{transformer_encoder_layer.1} parent=5 // pred_check
        _
      $region70: #{transformer_encoder_layer.1} parent=5 // pred_check_branch
        %394 = sbr.rel (%p391) target = $region72
      $region71: #{transformer_encoder_layer.1} parent=5 // pred_region
        %s395 = ssub.s32 %s22, 1
        %p396 = scmp.lt.s32.totalorder %s27, 1
        %s397 = scalar_select %p396, %s27, 1
        %s398 = smul.addr %s397, 2
        %s399 = smul.addr %s398, 8
        %s400 = scalar_lea.vmem %s0, %s399
        %p401 = pneg %p48
        %p402 = pneg %p45
        %p403 = pneg %p69
        %p404 = pneg %p66
        %p405 = pneg %p90
        %p406 = pneg %p87
        %p407 = pneg %p111
        %p408 = pneg %p108
        %p409 = pneg %p132
        %p410 = pneg %p129
        %p411 = pneg %p153
        %p412 = pneg %p150
        %p413 = pneg %p174
        %p414 = pneg %p171
        %p415 = pneg %p195
        %p416 = pneg %p192
        %p417 = pneg %p216
        %p418 = pneg %p213
        %p419 = pneg %p237
        %p420 = pneg %p234
        %p421 = pneg %p258
        %p422 = pneg %p255
        %p423 = pneg %p279
        %p424 = pneg %p276
        %p425 = pneg %p300
        %p426 = pneg %p297
        %p427 = pneg %p326
        %p428 = pneg %p323
        %s429 = sand.u32 %s313, 1
        %s430 = scalar_lea.sflag [#allocation3], %s429
        %s431 = sand.u32 %s313, 1
        %s432 = smul.addr %s431, 16
        %s433 = scalar_lea.vmem [#allocation2], %s432
        %p434 = scmp.lt.s32.totalorder %s27, 1
        %s435 = scalar_select %p434, %s27, 1
        %s436 = smul.addr %s435, 2
        %s437 = smul.addr %s436, 8
        %s438 = scalar_lea.vmem %s0, %s437
        %v440 = vld [vmem:[%s438] sm:$0xff]
        %v441 = vld [vmem:[%s438 + $0x8] sm:$0xff]
        %v442 = vld [vmem:[%s9] sm:$0x1]
        %v443 = vld [vmem:[%s10] sm:$0x1]
        %vm444 = vcmask 523264
        %v445 = vsel %vm444, %v440, 0.0
        %446 = vadd.xlane.f32.xlu0 %v445
        %v447 = vpop.xlane.xlu0 %446
        %v448 = vsel %vm444, %v441, 0.0
        %449 = vadd.xlane.f32.xlu0 %v448
        %v450 = vpop.xlane.xlu0 %449
        %v451 = vrcp.pop 64.0
        %v452 = vmul.f32 %v447, %v451
        %v453 = vmul.f32 %v450, %v451
        %v454 = vsub.f32 %v440, %v452
        %v455 = vsub.f32 %v441, %v453
        %v456 = vmul.f32 %v454, %v454
        %v457 = vmul.f32 %v455, %v455
        %v458 = vsel %vm444, %v456, 0.0
        %459 = vadd.xlane.f32.xlu0 %v458
        %v460 = vpop.xlane.xlu0 %459
        %v461 = vsel %vm444, %v457, 0.0
        %462 = vadd.xlane.f32.xlu0 %v461
        %v463 = vpop.xlane.xlu0 %462
        %v464 = vmul.f32 %v460, %v451
        %v465 = vmul.f32 %v463, %v451
        %v466 = vadd.f32 %v464, 1e-05
        %v467 = vadd.f32 %v465, 1e-05
        %v468 = vrsqrt.pop %v466
        %v469 = vrsqrt.pop %v467
        %v470 = vmul.f32 %v454, %v468
        %v471 = vmul.f32 %v455, %v469
        %v473 = vlaneseq
        %v474 = vshrl.u32 %v473, 7
        %v475 = vsub.s32 0, %v474
        %v476 = vrot.slane %v442, %v475
        %v478 = vmul.f32 %v470, %v476
        %v479 = vmul.f32 %v471, %v476
        %v481 = vlaneseq
        %v482 = vshrl.u32 %v481, 7
        %v483 = vsub.s32 0, %v482
        %v484 = vrot.slane %v443, %v483
        %v486 = vadd.f32 %v478, %v484
        %v487 = vadd.f32 %v479, %v484
        %v488 = vpack.c.bf16 %v487, %v486
        %v489 = vld [vmem:[%s1] sm:$0xf]
        %v490 = vld [vmem:[%s1 + $0x4] sm:$0xf]
        %v491 = vld [vmem:[%s1 + $0x8] sm:$0xf]
        %v492 = vld [vmem:[%s1 + $0xc] sm:$0xf]
        %v493 = vld [vmem:[%s1 + $0x10] sm:$0xf]
        %v494 = vld [vmem:[%s1 + $0x14] sm:$0xf]
        %v495 = vld [vmem:[%s1 + $0x18] sm:$0xf]
        %v496 = vld [vmem:[%s1 + $0x1c] sm:$0xf]
        %v505 = vunpack.c.l.b16 %v489
        %v506 = vunpack.c.l.b16 %v490
        %v507 = vunpack.c.l.b16 %v491
        %v508 = vunpack.c.l.b16 %v492
        %v509 = vunpack.c.l.b16 %v493
        %v510 = vunpack.c.l.b16 %v494
        %v511 = vunpack.c.l.b16 %v495
        %v512 = vunpack.c.l.b16 %v496
        %v513 = vpack.c.b16 %v506, %v505
        %v514 = vpack.c.b16 %v508, %v507
        %v515 = vpack.c.b16 %v510, %v509
        %v516 = vpack.c.b16 %v512, %v511
        %v522 = vsel %vm444, %v488, 0
        %524 = vmatprep.subr.bf16.mxu0 0
        %525 = vmatpush1.bf16.msra.mxu0 %v513
        %526 = vmatprep.subr.bf16.mxu0 0
        %527 = vmatpush1.bf16.msra.mxu0 %v514
        %528 = vmatprep.subr.bf16.mxu0 0
        %529 = vmatpush1.bf16.msra.mxu0 %v515
        %530 = vmatprep.subr.bf16.mxu0 0
        %531 = vmatpush1.bf16.msra.mxu0 %v516
        %532 = vmatprep.subr.bf16.mxu0 0
        %533 = vmatpush1.bf16.msra.mxu0 0
        %534 = vmatprep.subr.bf16.mxu0 0
        %535 = vmatpush1.bf16.msra.mxu0 0
        %536 = vmatprep.subr.bf16.mxu0 0
        %537 = vmatpush1.bf16.msra.mxu0 0
        %538 = vmatprep.subr.bf16.mxu0 0
        %539 = vmatpush1.bf16.msra.mxu0 0
        %540 = vmatprep.subr.bf16.mxu0 0
        %541 = vmatpush1.bf16.msra.mxu0 0
        %542 = vmatprep.subr.bf16.mxu0 0
        %543 = vmatpush1.bf16.msra.mxu0 0
        %544 = vmatprep.subr.bf16.mxu0 0
        %545 = vmatpush1.bf16.msra.mxu0 0
        %546 = vmatprep.subr.bf16.mxu0 0
        %547 = vmatpush1.bf16.msra.mxu0 0
        %548 = vmatprep.subr.bf16.mxu0 0
        %549 = vmatpush1.bf16.msra.mxu0 0
        %550 = vmatprep.subr.bf16.mxu0 0
        %551 = vmatpush1.bf16.msra.mxu0 0
        %552 = vmatprep.subr.bf16.mxu0 0
        %553 = vmatpush1.bf16.msra.mxu0 0
        %554 = vmatprep.subr.bf16.mxu0 0
        %555 = vmatpush1.bf16.msra.mxu0 0
        %556 = vmatprep.mubr.bf16.mxu0 0
        %557 = vmatmul.mubr.bf16.gmra.mrb[0].mxu0 %v522
        %v558 = vpop.f32.mrb[0].mxu0
        %v559 = vadd.f32 0.0, %v558
        %v560 = vpop.f32.mrb[0].mxu0
        %v561 = vpop.f32.mrb[0].mxu0
        %v562 = vadd.f32 0.0, %v561
        %v563 = vpop.f32.mrb[0].mxu0
        %564 = vdwg.mxu0
        %v565 = vpack.c.bf16 %v562, %v559
        %v566 = vld [vmem:[%s2] sm:$0xf]
        %v567 = vld [vmem:[%s2 + $0x4] sm:$0xf]
        %v568 = vld [vmem:[%s2 + $0x8] sm:$0xf]
        %v569 = vld [vmem:[%s2 + $0xc] sm:$0xf]
        %v570 = vld [vmem:[%s2 + $0x10] sm:$0xf]
        %v571 = vld [vmem:[%s2 + $0x14] sm:$0xf]
        %v572 = vld [vmem:[%s2 + $0x18] sm:$0xf]
        %v573 = vld [vmem:[%s2 + $0x1c] sm:$0xf]
        %v582 = vunpack.c.l.b16 %v566
        %v583 = vunpack.c.l.b16 %v567
        %v584 = vunpack.c.l.b16 %v568
        %v585 = vunpack.c.l.b16 %v569
        %v586 = vunpack.c.l.b16 %v570
        %v587 = vunpack.c.l.b16 %v571
        %v588 = vunpack.c.l.b16 %v572
        %v589 = vunpack.c.l.b16 %v573
        %v590 = vpack.c.b16 %v583, %v582
        %v591 = vpack.c.b16 %v585, %v584
        %v592 = vpack.c.b16 %v587, %v586
        %v593 = vpack.c.b16 %v589, %v588
        %598 = vmatprep.subr.bf16.mxu0 0
        %599 = vmatpush1.bf16.msra.mxu0 %v590
        %600 = vmatprep.subr.bf16.mxu0 0
        %601 = vmatpush1.bf16.msra.mxu0 %v591
        %602 = vmatprep.subr.bf16.mxu0 0
        %603 = vmatpush1.bf16.msra.mxu0 %v592
        %604 = vmatprep.subr.bf16.mxu0 0
        %605 = vmatpush1.bf16.msra.mxu0 %v593
        %606 = vmatprep.subr.bf16.mxu0 0
        %607 = vmatpush1.bf16.msra.mxu0 0
        %608 = vmatprep.subr.bf16.mxu0 0
        %609 = vmatpush1.bf16.msra.mxu0 0
        %610 = vmatprep.subr.bf16.mxu0 0
        %611 = vmatpush1.bf16.msra.mxu0 0
        %612 = vmatprep.subr.bf16.mxu0 0
        %613 = vmatpush1.bf16.msra.mxu0 0
        %614 = vmatprep.subr.bf16.mxu0 0
        %615 = vmatpush1.bf16.msra.mxu0 0
        %616 = vmatprep.subr.bf16.mxu0 0
        %617 = vmatpush1.bf16.msra.mxu0 0
        %618 = vmatprep.subr.bf16.mxu0 0
        %619 = vmatpush1.bf16.msra.mxu0 0
        %620 = vmatprep.subr.bf16.mxu0 0
        %621 = vmatpush1.bf16.msra.mxu0 0
        %622 = vmatprep.subr.bf16.mxu0 0
        %623 = vmatpush1.bf16.msra.mxu0 0
        %624 = vmatprep.subr.bf16.mxu0 0
        %625 = vmatpush1.bf16.msra.mxu0 0
        %626 = vmatprep.subr.bf16.mxu0 0
        %627 = vmatpush1.bf16.msra.mxu0 0
        %628 = vmatprep.subr.bf16.mxu0 0
        %629 = vmatpush1.bf16.msra.mxu0 0
        %630 = vmatprep.mubr.bf16.mxu0 0
        %631 = vmatmul.mubr.bf16.gmra.mrb[0].mxu0 %v522
        %v632 = vpop.f32.mrb[0].mxu0
        %v633 = vadd.f32 0.0, %v632
        %v634 = vpop.f32.mrb[0].mxu0
        %v635 = vpop.f32.mrb[0].mxu0
        %v636 = vadd.f32 0.0, %v635
        %v637 = vpop.f32.mrb[0].mxu0
        %638 = vdwg.mxu0
        %v639 = vpack.c.bf16 %v636, %v633
        %v640 = vld [vmem:[%s3] sm:$0xf]
        %v641 = vld [vmem:[%s3 + $0x4] sm:$0xf]
        %v642 = vld [vmem:[%s3 + $0x8] sm:$0xf]
        %v643 = vld [vmem:[%s3 + $0xc] sm:$0xf]
        %v644 = vld [vmem:[%s3 + $0x10] sm:$0xf]
        %v645 = vld [vmem:[%s3 + $0x14] sm:$0xf]
        %v646 = vld [vmem:[%s3 + $0x18] sm:$0xf]
        %v647 = vld [vmem:[%s3 + $0x1c] sm:$0xf]
        %v656 = vunpack.c.l.b16 %v640
        %v657 = vunpack.c.l.b16 %v641
        %v658 = vunpack.c.l.b16 %v642
        %v659 = vunpack.c.l.b16 %v643
        %v660 = vunpack.c.l.b16 %v644
        %v661 = vunpack.c.l.b16 %v645
        %v662 = vunpack.c.l.b16 %v646
        %v663 = vunpack.c.l.b16 %v647
        %v664 = vpack.c.b16 %v657, %v656
        %v665 = vpack.c.b16 %v659, %v658
        %v666 = vpack.c.b16 %v661, %v660
        %v667 = vpack.c.b16 %v663, %v662
        %672 = vmatprep.subr.bf16.mxu0 0
        %673 = vmatpush1.bf16.msra.mxu0 %v664
        %674 = vmatprep.subr.bf16.mxu0 0
        %675 = vmatpush1.bf16.msra.mxu0 %v665
        %676 = vmatprep.subr.bf16.mxu0 0
        %677 = vmatpush1.bf16.msra.mxu0 %v666
        %678 = vmatprep.subr.bf16.mxu0 0
        %679 = vmatpush1.bf16.msra.mxu0 %v667
        %680 = vmatprep.subr.bf16.mxu0 0
        %681 = vmatpush1.bf16.msra.mxu0 0
        %682 = vmatprep.subr.bf16.mxu0 0
        %683 = vmatpush1.bf16.msra.mxu0 0
        %684 = vmatprep.subr.bf16.mxu0 0
        %685 = vmatpush1.bf16.msra.mxu0 0
        %686 = vmatprep.subr.bf16.mxu0 0
        %687 = vmatpush1.bf16.msra.mxu0 0
        %688 = vmatprep.subr.bf16.mxu0 0
        %689 = vmatpush1.bf16.msra.mxu0 0
        %690 = vmatprep.subr.bf16.mxu0 0
        %691 = vmatpush1.bf16.msra.mxu0 0
        %692 = vmatprep.subr.bf16.mxu0 0
        %693 = vmatpush1.bf16.msra.mxu0 0
        %694 = vmatprep.subr.bf16.mxu0 0
        %695 = vmatpush1.bf16.msra.mxu0 0
        %696 = vmatprep.subr.bf16.mxu0 0
        %697 = vmatpush1.bf16.msra.mxu0 0
        %698 = vmatprep.subr.bf16.mxu0 0
        %699 = vmatpush1.bf16.msra.mxu0 0
        %700 = vmatprep.subr.bf16.mxu0 0
        %701 = vmatpush1.bf16.msra.mxu0 0
        %702 = vmatprep.subr.bf16.mxu0 0
        %703 = vmatpush1.bf16.msra.mxu0 0
        %704 = vmatprep.mubr.bf16.mxu0 0
        %705 = vmatmul.mubr.bf16.gmra.mrb[0].mxu0 %v522
        %v706 = vpop.f32.mrb[0].mxu0
        %v707 = vadd.f32 0.0, %v706
        %v708 = vpop.f32.mrb[0].mxu0
        %v709 = vpop.f32.mrb[0].mxu0
        %v710 = vadd.f32 0.0, %v709
        %v711 = vpop.f32.mrb[0].mxu0
        %712 = vdwg.mxu0
        %v713 = vpack.c.bf16 %v710, %v707
        %vm714 = vcmask 130048
        %v716 = vsel %vm714, %v565, 0
        %v719 = vsel %vm714, %v639, 0
        %721 = vmatprep.subr.bf16.mxu0 0
        %722 = vmatpush1.bf16.xpose.msra.mxu0 %v719
        %723 = vmatprep.subr.bf16.mxu0 0
        %724 = vmatpush1.bf16.xpose.msra.mxu0 0
        %725 = vmatprep.subr.bf16.mxu0 0
        %726 = vmatpush1.bf16.xpose.msra.mxu0 0
        %727 = vmatprep.subr.bf16.mxu0 0
        %728 = vmatpush1.bf16.xpose.msra.mxu0 0
        %729 = vmatprep.subr.bf16.mxu0 0
        %730 = vmatpush1.bf16.xpose.msra.mxu0 0
        %731 = vmatprep.subr.bf16.mxu0 0
        %732 = vmatpush1.bf16.xpose.msra.mxu0 0
        %733 = vmatprep.subr.bf16.mxu0 0
        %734 = vmatpush1.bf16.xpose.msra.mxu0 0
        %735 = vmatprep.subr.bf16.mxu0 0
        %736 = vmatpush1.bf16.xpose.msra.mxu0 0
        %737 = vmatprep.subr.bf16.mxu0 0
        %738 = vmatpush1.bf16.xpose.msra.mxu0 0
        %739 = vmatprep.subr.bf16.mxu0 0
        %740 = vmatpush1.bf16.xpose.msra.mxu0 0
        %741 = vmatprep.subr.bf16.mxu0 0
        %742 = vmatpush1.bf16.xpose.msra.mxu0 0
        %743 = vmatprep.subr.bf16.mxu0 0
        %744 = vmatpush1.bf16.xpose.msra.mxu0 0
        %745 = vmatprep.subr.bf16.mxu0 0
        %746 = vmatpush1.bf16.xpose.msra.mxu0 0
        %747 = vmatprep.subr.bf16.mxu0 0
        %748 = vmatpush1.bf16.xpose.msra.mxu0 0
        %749 = vmatprep.subr.bf16.mxu0 0
        %750 = vmatpush1.bf16.xpose.msra.mxu0 0
        %751 = vmatprep.subr.bf16.mxu0 0
        %752 = vmatpush1.bf16.xpose.msra.mxu0 0
        %753 = vmatprep.mubr.bf16.mxu0 0
        %754 = vmatmul.mubr.bf16.gmra.mrb[0].mxu0 %v716
        %v755 = vpop.f32.mrb[0].mxu0
        %v756 = vadd.f32 0.0, %v755
        %v757 = vpop.f32.mrb[0].mxu0
        %v758 = vpop.f32.mrb[0].mxu0
        %v759 = vadd.f32 0.0, %v758
        %v760 = vpop.f32.mrb[0].mxu0
        %761 = vdwg.mxu0
        %v762 = vsel %vm714, %v756, -inf
        %763 = vmax.xlane.f32.xlu0 %v762
        %v764 = vpop.xlane.xlu0 %763
        %v765 = vsel %vm714, %v759, -inf
        %766 = vmax.xlane.f32.xlu0 %v765
        %v767 = vpop.xlane.xlu0 %766
        %v768 = vsub.f32 %v756, %v764
        %v769 = vsub.f32 %v759, %v767
        %v770 = vmul.f32 %v768, 1.442695
        %v771 = vpow.pop %v770
        %v772 = vmul.f32 %v769, 1.442695
        %v773 = vpow.pop %v772
        %v774 = vsel %vm714, %v771, 0.0
        %775 = vadd.xlane.f32.xlu0 %v774
        %v776 = vpop.xlane.xlu0 %775
        %v777 = vsel %vm714, %v773, 0.0
        %778 = vadd.xlane.f32.xlu0 %v777
        %v779 = vpop.xlane.xlu0 %778
        %v780 = vrcp.pop %v776
        %v781 = vrcp.pop %v779
        %v782 = vmul.f32 %v771, %v780
        %v783 = vmul.f32 %v773, %v781
        %v784 = vpack.c.bf16 %v783, %v782
        %v786 = vsel %vm714, %v784, 0
        %788 = vmatprep.subr.bf16.mxu0 0
        %789 = vmatpush1.bf16.msra.mxu0 %v713
        %790 = vmatprep.subr.bf16.mxu0 0
        %791 = vmatpush1.bf16.msra.mxu0 0
        %792 = vmatprep.subr.bf16.mxu0 0
        %793 = vmatpush1.bf16.msra.mxu0 0
        %794 = vmatprep.subr.bf16.mxu0 0
        %795 = vmatpush1.bf16.msra.mxu0 0
        %796 = vmatprep.subr.bf16.mxu0 0
        %797 = vmatpush1.bf16.msra.mxu0 0
        %798 = vmatprep.subr.bf16.mxu0 0
        %799 = vmatpush1.bf16.msra.mxu0 0
        %800 = vmatprep.subr.bf16.mxu0 0
        %801 = vmatpush1.bf16.msra.mxu0 0
        %802 = vmatprep.subr.bf16.mxu0 0
        %803 = vmatpush1.bf16.msra.mxu0 0
        %804 = vmatprep.subr.bf16.mxu0 0
        %805 = vmatpush1.bf16.msra.mxu0 0
        %806 = vmatprep.subr.bf16.mxu0 0
        %807 = vmatpush1.bf16.msra.mxu0 0
        %808 = vmatprep.subr.bf16.mxu0 0
        %809 = vmatpush1.bf16.msra.mxu0 0
        %810 = vmatprep.subr.bf16.mxu0 0
        %811 = vmatpush1.bf16.msra.mxu0 0
        %812 = vmatprep.subr.bf16.mxu0 0
        %813 = vmatpush1.bf16.msra.mxu0 0
        %814 = vmatprep.subr.bf16.mxu0 0
        %815 = vmatpush1.bf16.msra.mxu0 0
        %816 = vmatprep.subr.bf16.mxu0 0
        %817 = vmatpush1.bf16.msra.mxu0 0
        %818 = vmatprep.subr.bf16.mxu0 0
        %819 = vmatpush1.bf16.msra.mxu0 0
        %820 = vmatprep.mubr.bf16.mxu0 0
        %821 = vmatmul.mubr.bf16.gmra.mrb[0].mxu0 %v786
        %v822 = vpop.f32.mrb[0].mxu0
        %v823 = vadd.f32 0.0, %v822
        %v824 = vpop.f32.mrb[0].mxu0
        %v825 = vpop.f32.mrb[0].mxu0
        %v826 = vadd.f32 0.0, %v825
        %v827 = vpop.f32.mrb[0].mxu0
        %828 = vdwg.mxu0
        %v829 = vpack.c.bf16 %v826, %v823
        %v830 = vld [vmem:[%s4] sm:$0xf]
        %v831 = vld [vmem:[%s4 + $0x4] sm:$0xf]
        %s832 = scalar_lea.vmem %s1, 32
        %v833 = vld [vmem:[%s832] sm:$0xf]
        %v834 = vld [vmem:[%s832 + $0x4] sm:$0xf]
        %v835 = vld [vmem:[%s832 + $0x8] sm:$0xf]
        %v836 = vld [vmem:[%s832 + $0xc] sm:$0xf]
        %v837 = vld [vmem:[%s832 + $0x10] sm:$0xf]
        %v838 = vld [vmem:[%s832 + $0x14] sm:$0xf]
        %v839 = vld [vmem:[%s832 + $0x18] sm:$0xf]
        %v840 = vld [vmem:[%s832 + $0x1c] sm:$0xf]
        %v849 = vunpack.c.l.b16 %v833
        %v850 = vunpack.c.l.b16 %v834
        %v851 = vunpack.c.l.b16 %v835
        %v852 = vunpack.c.l.b16 %v836
        %v853 = vunpack.c.l.b16 %v837
        %v854 = vunpack.c.l.b16 %v838
        %v855 = vunpack.c.l.b16 %v839
        %v856 = vunpack.c.l.b16 %v840
        %v857 = vpack.c.b16 %v850, %v849
        %v858 = vpack.c.b16 %v852, %v851
        %v859 = vpack.c.b16 %v854, %v853
        %v860 = vpack.c.b16 %v856, %v855
        %865 = vmatprep.subr.bf16.mxu0 0
        %866 = vmatpush1.bf16.msra.mxu0 %v857
        %867 = vmatprep.subr.bf16.mxu0 0
        %868 = vmatpush1.bf16.msra.mxu0 %v858
        %869 = vmatprep.subr.bf16.mxu0 0
        %870 = vmatpush1.bf16.msra.mxu0 %v859
        %871 = vmatprep.subr.bf16.mxu0 0
        %872 = vmatpush1.bf16.msra.mxu0 %v860
        %873 = vmatprep.subr.bf16.mxu0 0
        %874 = vmatpush1.bf16.msra.mxu0 0
        %875 = vmatprep.subr.bf16.mxu0 0
        %876 = vmatpush1.bf16.msra.mxu0 0
        %877 = vmatprep.subr.bf16.mxu0 0
        %878 = vmatpush1.bf16.msra.mxu0 0
        %879 = vmatprep.subr.bf16.mxu0 0
        %880 = vmatpush1.bf16.msra.mxu0 0
        %881 = vmatprep.subr.bf16.mxu0 0
        %882 = vmatpush1.bf16.msra.mxu0 0
        %883 = vmatprep.subr.bf16.mxu0 0
        %884 = vmatpush1.bf16.msra.mxu0 0
        %885 = vmatprep.subr.bf16.mxu0 0
        %886 = vmatpush1.bf16.msra.mxu0 0
        %887 = vmatprep.subr.bf16.mxu0 0
        %888 = vmatpush1.bf16.msra.mxu0 0
        %889 = vmatprep.subr.bf16.mxu0 0
        %890 = vmatpush1.bf16.msra.mxu0 0
        %891 = vmatprep.subr.bf16.mxu0 0
        %892 = vmatpush1.bf16.msra.mxu0 0
        %893 = vmatprep.subr.bf16.mxu0 0
        %894 = vmatpush1.bf16.msra.mxu0 0
        %895 = vmatprep.subr.bf16.mxu0 0
        %896 = vmatpush1.bf16.msra.mxu0 0
        %897 = vmatprep.mubr.bf16.mxu0 0
        %898 = vmatmul.mubr.bf16.gmra.mrb[0].mxu0 %v522
        %v899 = vpop.f32.mrb[0].mxu0
        %v900 = vadd.f32 0.0, %v899
        %v901 = vpop.f32.mrb[0].mxu0
        %v902 = vpop.f32.mrb[0].mxu0
        %v903 = vadd.f32 0.0, %v902
        %v904 = vpop.f32.mrb[0].mxu0
        %905 = vdwg.mxu0
        %v906 = vpack.c.bf16 %v903, %v900
        %s907 = scalar_lea.vmem %s2, 32
        %v908 = vld [vmem:[%s907] sm:$0xf]
        %v909 = vld [vmem:[%s907 + $0x4] sm:$0xf]
        %v910 = vld [vmem:[%s907 + $0x8] sm:$0xf]
        %v911 = vld [vmem:[%s907 + $0xc] sm:$0xf]
        %v912 = vld [vmem:[%s907 + $0x10] sm:$0xf]
        %v913 = vld [vmem:[%s907 + $0x14] sm:$0xf]
        %v914 = vld [vmem:[%s907 + $0x18] sm:$0xf]
        %v915 = vld [vmem:[%s907 + $0x1c] sm:$0xf]
        %v924 = vunpack.c.l.b16 %v908
        %v925 = vunpack.c.l.b16 %v909
        %v926 = vunpack.c.l.b16 %v910
        %v927 = vunpack.c.l.b16 %v911
        %v928 = vunpack.c.l.b16 %v912
        %v929 = vunpack.c.l.b16 %v913
        %v930 = vunpack.c.l.b16 %v914
        %v931 = vunpack.c.l.b16 %v915
        %v932 = vpack.c.b16 %v925, %v924
        %v933 = vpack.c.b16 %v927, %v926
        %v934 = vpack.c.b16 %v929, %v928
        %v935 = vpack.c.b16 %v931, %v930
        %940 = vmatprep.subr.bf16.mxu0 0
        %941 = vmatpush1.bf16.msra.mxu0 %v932
        %942 = vmatprep.subr.bf16.mxu0 0
        %943 = vmatpush1.bf16.msra.mxu0 %v933
        %944 = vmatprep.subr.bf16.mxu0 0
        %945 = vmatpush1.bf16.msra.mxu0 %v934
        %946 = vmatprep.subr.bf16.mxu0 0
        %947 = vmatpush1.bf16.msra.mxu0 %v935
        %948 = vmatprep.subr.bf16.mxu0 0
        %949 = vmatpush1.bf16.msra.mxu0 0
        %950 = vmatprep.subr.bf16.mxu0 0
        %951 = vmatpush1.bf16.msra.mxu0 0
        %952 = vmatprep.subr.bf16.mxu0 0
        %953 = vmatpush1.bf16.msra.mxu0 0
        %954 = vmatprep.subr.bf16.mxu0 0
        %955 = vmatpush1.bf16.msra.mxu0 0
        %956 = vmatprep.subr.bf16.mxu0 0
        %957 = vmatpush1.bf16.msra.mxu0 0
        %958 = vmatprep.subr.bf16.mxu0 0
        %959 = vmatpush1.bf16.msra.mxu0 0
        %960 = vmatprep.subr.bf16.mxu0 0
        %961 = vmatpush1.bf16.msra.mxu0 0
        %962 = vmatprep.subr.bf16.mxu0 0
        %963 = vmatpush1.bf16.msra.mxu0 0
        %964 = vmatprep.subr.bf16.mxu0 0
        %965 = vmatpush1.bf16.msra.mxu0 0
        %966 = vmatprep.subr.bf16.mxu0 0
        %967 = vmatpush1.bf16.msra.mxu0 0
        %968 = vmatprep.subr.bf16.mxu0 0
        %969 = vmatpush1.bf16.msra.mxu0 0
        %970 = vmatprep.subr.bf16.mxu0 0
        %971 = vmatpush1.bf16.msra.mxu0 0
        %972 = vmatprep.mubr.bf16.mxu0 0
        %973 = vmatmul.mubr.bf16.gmra.mrb[0].mxu0 %v522
        %v974 = vpop.f32.mrb[0].mxu0
        %v975 = vadd.f32 0.0, %v974
        %v976 = vpop.f32.mrb[0].mxu0
        %v977 = vpop.f32.mrb[0].mxu0
        %v978 = vadd.f32 0.0, %v977
        %v979 = vpop.f32.mrb[0].mxu0
        %980 = vdwg.mxu0
        %v981 = vpack.c.bf16 %v978, %v975
        %s982 = scalar_lea.vmem %s3, 32
        %v983 = vld [vmem:[%s982] sm:$0xf]
        %v984 = vld [vmem:[%s982 + $0x4] sm:$0xf]
        %v985 = vld [vmem:[%s982 + $0x8] sm:$0xf]
        %v986 = vld [vmem:[%s982 + $0xc] sm:$0xf]
        %v987 = vld [vmem:[%s982 + $0x10] sm:$0xf]
        %v988 = vld [vmem:[%s982 + $0x14] sm:$0xf]
        %v989 = vld [vmem:[%s982 + $0x18] sm:$0xf]
        %v990 = vld [vmem:[%s982 + $0x1c] sm:$0xf]
        %v999 = vunpack.c.l.b16 %v983
        %v1000 = vunpack.c.l.b16 %v984
        %v1001 = vunpack.c.l.b16 %v985
        %v1002 = vunpack.c.l.b16 %v986
        %v1003 = vunpack.c.l.b16 %v987
        %v1004 = vunpack.c.l.b16 %v988
        %v1005 = vunpack.c.l.b16 %v989
        %v1006 = vunpack.c.l.b16 %v990
        %v1007 = vpack.c.b16 %v1000, %v999
        %v1008 = vpack.c.b16 %v1002, %v1001
        %v1009 = vpack.c.b16 %v1004, %v1003
        %v1010 = vpack.c.b16 %v1006, %v1005
        %1015 = vmatprep.subr.bf16.mxu0 0
        %1016 = vmatpush1.bf16.msra.mxu0 %v1007
        %1017 = vmatprep.subr.bf16.mxu0 0
        %1018 = vmatpush1.bf16.msra.mxu0 %v1008
        %1019 = vmatprep.subr.bf16.mxu0 0
        %1020 = vmatpush1.bf16.msra.mxu0 %v1009
        %1021 = vmatprep.subr.bf16.mxu0 0
        %1022 = vmatpush1.bf16.msra.mxu0 %v1010
        %1023 = vmatprep.subr.bf16.mxu0 0
        %1024 = vmatpush1.bf16.msra.mxu0 0
        %1025 = vmatprep.subr.bf16.mxu0 0
        %1026 = vmatpush1.bf16.msra.mxu0 0
        %1027 = vmatprep.subr.bf16.mxu0 0
        %1028 = vmatpush1.bf16.msra.mxu0 0
        %1029 = vmatprep.subr.bf16.mxu0 0
        %1030 = vmatpush1.bf16.msra.mxu0 0
        %1031 = vmatprep.subr.bf16.mxu0 0
        %1032 = vmatpush1.bf16.msra.mxu0 0
        %1033 = vmatprep.subr.bf16.mxu0 0
        %1034 = vmatpush1.bf16.msra.mxu0 0
        %1035 = vmatprep.subr.bf16.mxu0 0
        %1036 = vmatpush1.bf16.msra.mxu0 0
        %1037 = vmatprep.subr.bf16.mxu0 0
        %1038 = vmatpush1.bf16.msra.mxu0 0
        %1039 = vmatprep.subr.bf16.mxu0 0
        %1040 = vmatpush1.bf16.msra.mxu0 0
        %1041 = vmatprep.subr.bf16.mxu0 0
        %1042 = vmatpush1.bf16.msra.mxu0 0
        %1043 = vmatprep.subr.bf16.mxu0 0
        %1044 = vmatpush1.bf16.msra.mxu0 0
        %1045 = vmatprep.subr.bf16.mxu0 0
        %1046 = vmatpush1.bf16.msra.mxu0 0
        %1047 = vmatprep.mubr.bf16.mxu0 0
        %1048 = vmatmul.mubr.bf16.gmra.mrb[0].mxu0 %v522
        %v1049 = vpop.f32.mrb[0].mxu0
        %v1050 = vadd.f32 0.0, %v1049
        %v1051 = vpop.f32.mrb[0].mxu0
        %v1052 = vpop.f32.mrb[0].mxu0
        %v1053 = vadd.f32 0.0, %v1052
        %v1054 = vpop.f32.mrb[0].mxu0
        %1055 = vdwg.mxu0
        %v1056 = vpack.c.bf16 %v1053, %v1050
        %v1058 = vsel %vm714, %v906, 0
        %v1061 = vsel %vm714, %v981, 0
        %1063 = vmatprep.subr.bf16.mxu0 0
        %1064 = vmatpush1.bf16.xpose.msra.mxu0 %v1061
        %1065 = vmatprep.subr.bf16.mxu0 0
        %1066 = vmatpush1.bf16.xpose.msra.mxu0 0
        %1067 = vmatprep.subr.bf16.mxu0 0
        %1068 = vmatpush1.bf16.xpose.msra.mxu0 0
        %1069 = vmatprep.subr.bf16.mxu0 0
        %1070 = vmatpush1.bf16.xpose.msra.mxu0 0
        %1071 = vmatprep.subr.bf16.mxu0 0
        %1072 = vmatpush1.bf16.xpose.msra.mxu0 0
        %1073 = vmatprep.subr.bf16.mxu0 0
        %1074 = vmatpush1.bf16.xpose.msra.mxu0 0
        %1075 = vmatprep.subr.bf16.mxu0 0
        %1076 = vmatpush1.bf16.xpose.msra.mxu0 0
        %1077 = vmatprep.subr.bf16.mxu0 0
        %1078 = vmatpush1.bf16.xpose.msra.mxu0 0
        %1079 = vmatprep.subr.bf16.mxu0 0
        %1080 = vmatpush1.bf16.xpose.msra.mxu0 0
        %1081 = vmatprep.subr.bf16.mxu0 0
        %1082 = vmatpush1.bf16.xpose.msra.mxu0 0
        %1083 = vmatprep.subr.bf16.mxu0 0
        %1084 = vmatpush1.bf16.xpose.msra.mxu0 0
        %1085 = vmatprep.subr.bf16.mxu0 0
        %1086 = vmatpush1.bf16.xpose.msra.mxu0 0
        %1087 = vmatprep.subr.bf16.mxu0 0
        %1088 = vmatpush1.bf16.xpose.msra.mxu0 0
        %1089 = vmatprep.subr.bf16.mxu0 0
        %1090 = vmatpush1.bf16.xpose.msra.mxu0 0
        %1091 = vmatprep.subr.bf16.mxu0 0
        %1092 = vmatpush1.bf16.xpose.msra.mxu0 0
        %1093 = vmatprep.subr.bf16.mxu0 0
        %1094 = vmatpush1.bf16.xpose.msra.mxu0 0
        %1095 = vmatprep.mubr.bf16.mxu0 0
        %1096 = vmatmul.mubr.bf16.gmra.mrb[0].mxu0 %v1058
        %v1097 = vpop.f32.mrb[0].mxu0
        %v1098 = vadd.f32 0.0, %v1097
        %v1099 = vpop.f32.mrb[0].mxu0
        %v1100 = vpop.f32.mrb[0].mxu0
        %v1101 = vadd.f32 0.0, %v1100
        %v1102 = vpop.f32.mrb[0].mxu0
        %1103 = vdwg.mxu0
        %v1104 = vsel %vm714, %v1098, -inf
        %1105 = vmax.xlane.f32.xlu0 %v1104
        %v1106 = vpop.xlane.xlu0 %1105
        %v1107 = vsel %vm714, %v1101, -inf
        %1108 = vmax.xlane.f32.xlu0 %v1107
        %v1109 = vpop.xlane.xlu0 %1108
        %v1110 = vsub.f32 %v1098, %v1106
        %v1111 = vsub.f32 %v1101, %v1109
        %v1112 = vmul.f32 %v1110, 1.442695
        %v1113 = vpow.pop %v1112
        %v1114 = vmul.f32 %v1111, 1.442695
        %v1115 = vpow.pop %v1114
        %v1116 = vsel %vm714, %v1113, 0.0
        %1117 = vadd.xlane.f32.xlu0 %v1116
        %v1118 = vpop.xlane.xlu0 %1117
        %v1119 = vsel %vm714, %v1115, 0.0
        %1120 = vadd.xlane.f32.xlu0 %v1119
        %v1121 = vpop.xlane.xlu0 %1120
        %v1122 = vrcp.pop %v1118
        %v1123 = vrcp.pop %v1121
        %v1124 = vmul.f32 %v1113, %v1122
        %v1125 = vmul.f32 %v1115, %v1123
        %v1126 = vpack.c.bf16 %v1125, %v1124
        %v1128 = vsel %vm714, %v1126, 0
        %1130 = vmatprep.subr.bf16.mxu0 0
        %1131 = vmatpush1.bf16.msra.mxu0 %v1056
        %1132 = vmatprep.subr.bf16.mxu0 0
        %1133 = vmatpush1.bf16.msra.mxu0 0
        %1134 = vmatprep.subr.bf16.mxu0 0
        %1135 = vmatpush1.bf16.msra.mxu0 0
        %1136 = vmatprep.subr.bf16.mxu0 0
        %1137 = vmatpush1.bf16.msra.mxu0 0
        %1138 = vmatprep.subr.bf16.mxu0 0
        %1139 = vmatpush1.bf16.msra.mxu0 0
        %1140 = vmatprep.subr.bf16.mxu0 0
        %1141 = vmatpush1.bf16.msra.mxu0 0
        %1142 = vmatprep.subr.bf16.mxu0 0
        %1143 = vmatpush1.bf16.msra.mxu0 0
        %1144 = vmatprep.subr.bf16.mxu0 0
        %1145 = vmatpush1.bf16.msra.mxu0 0
        %1146 = vmatprep.subr.bf16.mxu0 0
        %1147 = vmatpush1.bf16.msra.mxu0 0
        %1148 = vmatprep.subr.bf16.mxu0 0
        %1149 = vmatpush1.bf16.msra.mxu0 0
        %1150 = vmatprep.subr.bf16.mxu0 0
        %1151 = vmatpush1.bf16.msra.mxu0 0
        %1152 = vmatprep.subr.bf16.mxu0 0
        %1153 = vmatpush1.bf16.msra.mxu0 0
        %1154 = vmatprep.subr.bf16.mxu0 0
        %1155 = vmatpush1.bf16.msra.mxu0 0
        %1156 = vmatprep.subr.bf16.mxu0 0
        %1157 = vmatpush1.bf16.msra.mxu0 0
        %1158 = vmatprep.subr.bf16.mxu0 0
        %1159 = vmatpush1.bf16.msra.mxu0 0
        %1160 = vmatprep.subr.bf16.mxu0 0
        %1161 = vmatpush1.bf16.msra.mxu0 0
        %1162 = vmatprep.mubr.bf16.mxu0 0
        %1163 = vmatmul.mubr.bf16.gmra.mrb[0].mxu0 %v1128
        %v1164 = vpop.f32.mrb[0].mxu0
        %v1165 = vadd.f32 0.0, %v1164
        %v1166 = vpop.f32.mrb[0].mxu0
        %v1167 = vpop.f32.mrb[0].mxu0
        %v1168 = vadd.f32 0.0, %v1167
        %v1169 = vpop.f32.mrb[0].mxu0
        %1170 = vdwg.mxu0
        %v1171 = vpack.c.bf16 %v1168, %v1165
        %s1172 = scalar_lea.vmem %s4, 8
        %v1173 = vld [vmem:[%s1172] sm:$0xf]
        %v1174 = vld [vmem:[%s1172 + $0x4] sm:$0xf]
        %v1177 = vunpack.c.l.b16 %v1173
        %v1178 = vunpack.c.l.b16 %v1174
        %v1179 = vpack.c.b16 %v1178, %v1177
        %v1182 = vsel %vm714, %v1171, 0
        %1184 = vmatprep.subr.bf16.mxu0 0
        %1185 = vmatpush1.bf16.msra.mxu0 %v1179
        %1186 = vmatprep.subr.bf16.mxu0 0
        %1187 = vmatpush1.bf16.msra.mxu0 0
        %1188 = vmatprep.subr.bf16.mxu0 0
        %1189 = vmatpush1.bf16.msra.mxu0 0
        %1190 = vmatprep.subr.bf16.mxu0 0
        %1191 = vmatpush1.bf16.msra.mxu0 0
        %1192 = vmatprep.subr.bf16.mxu0 0
        %1193 = vmatpush1.bf16.msra.mxu0 0
        %1194 = vmatprep.subr.bf16.mxu0 0
        %1195 = vmatpush1.bf16.msra.mxu0 0
        %1196 = vmatprep.subr.bf16.mxu0 0
        %1197 = vmatpush1.bf16.msra.mxu0 0
        %1198 = vmatprep.subr.bf16.mxu0 0
        %1199 = vmatpush1.bf16.msra.mxu0 0
        %1200 = vmatprep.subr.bf16.mxu0 0
        %1201 = vmatpush1.bf16.msra.mxu0 0
        %1202 = vmatprep.subr.bf16.mxu0 0
        %1203 = vmatpush1.bf16.msra.mxu0 0
        %1204 = vmatprep.subr.bf16.mxu0 0
        %1205 = vmatpush1.bf16.msra.mxu0 0
        %1206 = vmatprep.subr.bf16.mxu0 0
        %1207 = vmatpush1.bf16.msra.mxu0 0
        %1208 = vmatprep.subr.bf16.mxu0 0
        %1209 = vmatpush1.bf16.msra.mxu0 0
        %1210 = vmatprep.subr.bf16.mxu0 0
        %1211 = vmatpush1.bf16.msra.mxu0 0
        %1212 = vmatprep.subr.bf16.mxu0 0
        %1213 = vmatpush1.bf16.msra.mxu0 0
        %1214 = vmatprep.subr.bf16.mxu0 0
        %1215 = vmatpush1.bf16.msra.mxu0 0
        %1216 = vmatprep.mubr.bf16.mxu0 0
        %1217 = vmatmul.mubr.bf16.gmra.mrb[0].mxu0 %v1182
        %v1218 = vpop.f32.mrb[0].mxu0
        %v1219 = vadd.f32 0.0, %v1218
        %v1220 = vpop.f32.mrb[0].mxu0
        %v1221 = vpop.f32.mrb[0].mxu0
        %v1222 = vadd.f32 0.0, %v1221
        %v1223 = vpop.f32.mrb[0].mxu0
        %1224 = vdwg.mxu0
        %v1227 = vunpack.c.l.b16 %v830
        %v1228 = vunpack.c.l.b16 %v831
        %v1229 = vpack.c.b16 %v1228, %v1227
        %v1232 = vsel %vm714, %v829, 0
        %1234 = vmatprep.subr.bf16.mxu0 0
        %1235 = vmatpush1.bf16.msra.mxu0 %v1229
        %1236 = vmatprep.subr.bf16.mxu0 0
        %1237 = vmatpush1.bf16.msra.mxu0 0
        %1238 = vmatprep.subr.bf16.mxu0 0
        %1239 = vmatpush1.bf16.msra.mxu0 0
        %1240 = vmatprep.subr.bf16.mxu0 0
        %1241 = vmatpush1.bf16.msra.mxu0 0
        %1242 = vmatprep.subr.bf16.mxu0 0
        %1243 = vmatpush1.bf16.msra.mxu0 0
        %1244 = vmatprep.subr.bf16.mxu0 0
        %1245 = vmatpush1.bf16.msra.mxu0 0
        %1246 = vmatprep.subr.bf16.mxu0 0
        %1247 = vmatpush1.bf16.msra.mxu0 0
        %1248 = vmatprep.subr.bf16.mxu0 0
        %1249 = vmatpush1.bf16.msra.mxu0 0
        %1250 = vmatprep.subr.bf16.mxu0 0
        %1251 = vmatpush1.bf16.msra.mxu0 0
        %1252 = vmatprep.subr.bf16.mxu0 0
        %1253 = vmatpush1.bf16.msra.mxu0 0
        %1254 = vmatprep.subr.bf16.mxu0 0
        %1255 = vmatpush1.bf16.msra.mxu0 0
        %1256 = vmatprep.subr.bf16.mxu0 0
        %1257 = vmatpush1.bf16.msra.mxu0 0
        %1258 = vmatprep.subr.bf16.mxu0 0
        %1259 = vmatpush1.bf16.msra.mxu0 0
        %1260 = vmatprep.subr.bf16.mxu0 0
        %1261 = vmatpush1.bf16.msra.mxu0 0
        %1262 = vmatprep.subr.bf16.mxu0 0
        %1263 = vmatpush1.bf16.msra.mxu0 0
        %1264 = vmatprep.subr.bf16.mxu0 0
        %1265 = vmatpush1.bf16.msra.mxu0 0
        %1266 = vmatprep.mubr.bf16.mxu0 0
        %1267 = vmatmul.mubr.bf16.gmra.mrb[0].mxu0 %v1232
        %v1268 = vpop.f32.mrb[0].mxu0
        %v1269 = vadd.f32 %v1219, %v1268
        %v1270 = vpop.f32.mrb[0].mxu0
        %v1271 = vpop.f32.mrb[0].mxu0
        %v1272 = vadd.f32 %v1222, %v1271
        %v1273 = vpop.f32.mrb[0].mxu0
        %1274 = vdwg.mxu0
        %s1275 = scalar_lea.vmem %s1, 64
        %v1276 = vld [vmem:[%s1275] sm:$0xf]
        %v1277 = vld [vmem:[%s1275 + $0x4] sm:$0xf]
        %v1278 = vld [vmem:[%s1275 + $0x8] sm:$0xf]
        %v1279 = vld [vmem:[%s1275 + $0xc] sm:$0xf]
        %v1280 = vld [vmem:[%s1275 + $0x10] sm:$0xf]
        %v1281 = vld [vmem:[%s1275 + $0x14] sm:$0xf]
        %v1282 = vld [vmem:[%s1275 + $0x18] sm:$0xf]
        %v1283 = vld [vmem:[%s1275 + $0x1c] sm:$0xf]
        %v1292 = vunpack.c.l.b16 %v1276
        %v1293 = vunpack.c.l.b16 %v1277
        %v1294 = vunpack.c.l.b16 %v1278
        %v1295 = vunpack.c.l.b16 %v1279
        %v1296 = vunpack.c.l.b16 %v1280
        %v1297 = vunpack.c.l.b16 %v1281
        %v1298 = vunpack.c.l.b16 %v1282
        %v1299 = vunpack.c.l.b16 %v1283
        %v1300 = vpack.c.b16 %v1293, %v1292
        %v1301 = vpack.c.b16 %v1295, %v1294
        %v1302 = vpack.c.b16 %v1297, %v1296
        %v1303 = vpack.c.b16 %v1299, %v1298
        %1308 = vmatprep.subr.bf16.mxu0 0
        %1309 = vmatpush1.bf16.msra.mxu0 %v1300
        %1310 = vmatprep.subr.bf16.mxu0 0
        %1311 = vmatpush1.bf16.msra.mxu0 %v1301
        %1312 = vmatprep.subr.bf16.mxu0 0
        %1313 = vmatpush1.bf16.msra.mxu0 %v1302
        %1314 = vmatprep.subr.bf16.mxu0 0
        %1315 = vmatpush1.bf16.msra.mxu0 %v1303
        %1316 = vmatprep.subr.bf16.mxu0 0
        %1317 = vmatpush1.bf16.msra.mxu0 0
        %1318 = vmatprep.subr.bf16.mxu0 0
        %1319 = vmatpush1.bf16.msra.mxu0 0
        %1320 = vmatprep.subr.bf16.mxu0 0
        %1321 = vmatpush1.bf16.msra.mxu0 0
        %1322 = vmatprep.subr.bf16.mxu0 0
        %1323 = vmatpush1.bf16.msra.mxu0 0
        %1324 = vmatprep.subr.bf16.mxu0 0
        %1325 = vmatpush1.bf16.msra.mxu0 0
        %1326 = vmatprep.subr.bf16.mxu0 0
        %1327 = vmatpush1.bf16.msra.mxu0 0
        %1328 = vmatprep.subr.bf16.mxu0 0
        %1329 = vmatpush1.bf16.msra.mxu0 0
        %1330 = vmatprep.subr.bf16.mxu0 0
        %1331 = vmatpush1.bf16.msra.mxu0 0
        %1332 = vmatprep.subr.bf16.mxu0 0
        %1333 = vmatpush1.bf16.msra.mxu0 0
        %1334 = vmatprep.subr.bf16.mxu0 0
        %1335 = vmatpush1.bf16.msra.mxu0 0
        %1336 = vmatprep.subr.bf16.mxu0 0
        %1337 = vmatpush1.bf16.msra.mxu0 0
        %1338 = vmatprep.subr.bf16.mxu0 0
        %1339 = vmatpush1.bf16.msra.mxu0 0
        %1340 = vmatprep.mubr.bf16.mxu0 0
        %1341 = vmatmul.mubr.bf16.gmra.mrb[0].mxu0 %v522
        %v1342 = vpop.f32.mrb[0].mxu0
        %v1343 = vadd.f32 0.0, %v1342
        %v1344 = vpop.f32.mrb[0].mxu0
        %v1345 = vpop.f32.mrb[0].mxu0
        %v1346 = vadd.f32 0.0, %v1345
        %v1347 = vpop.f32.mrb[0].mxu0
        %1348 = vdwg.mxu0
        %v1349 = vpack.c.bf16 %v1346, %v1343
        %s1350 = scalar_lea.vmem %s2, 64
        %v1351 = vld [vmem:[%s1350] sm:$0xf]
        %v1352 = vld [vmem:[%s1350 + $0x4] sm:$0xf]
        %v1353 = vld [vmem:[%s1350 + $0x8] sm:$0xf]
        %v1354 = vld [vmem:[%s1350 + $0xc] sm:$0xf]
        %v1355 = vld [vmem:[%s1350 + $0x10] sm:$0xf]
        %v1356 = vld [vmem:[%s1350 + $0x14] sm:$0xf]
        %v1357 = vld [vmem:[%s1350 + $0x18] sm:$0xf]
        %v1358 = vld [vmem:[%s1350 + $0x1c] sm:$0xf]
        %v1367 = vunpack.c.l.b16 %v1351
        %v1368 = vunpack.c.l.b16 %v1352
        %v1369 = vunpack.c.l.b16 %v1353
        %v1370 = vunpack.c.l.b16 %v1354
        %v1371 = vunpack.c.l.b16 %v1355
        %v1372 = vunpack.c.l.b16 %v1356
        %v1373 = vunpack.c.l.b16 %v1357
        %v1374 = vunpack.c.l.b16 %v1358
        %v1375 = vpack.c.b16 %v1368, %v1367
        %v1376 = vpack.c.b16 %v1370, %v1369
        %v1377 = vpack.c.b16 %v1372, %v1371
        %v1378 = vpack.c.b16 %v1374, %v1373
        %1383 = vmatprep.subr.bf16.mxu0 0
        %1384 = vmatpush1.bf16.msra.mxu0 %v1375
        %1385 = vmatprep.subr.bf16.mxu0 0
        %1386 = vmatpush1.bf16.msra.mxu0 %v1376
        %1387 = vmatprep.subr.bf16.mxu0 0
        %1388 = vmatpush1.bf16.msra.mxu0 %v1377
        %1389 = vmatprep.subr.bf16.mxu0 0
        %1390 = vmatpush1.bf16.msra.mxu0 %v1378
        %1391 = vmatprep.subr.bf16.mxu0 0
        %1392 = vmatpush1.bf16.msra.mxu0 0
        %1393 = vmatprep.subr.bf16.mxu0 0
        %1394 = vmatpush1.bf16.msra.mxu0 0
        %1395 = vmatprep.subr.bf16.mxu0 0
        %1396 = vmatpush1.bf16.msra.mxu0 0
        %1397 = vmatprep.subr.bf16.mxu0 0
        %1398 = vmatpush1.bf16.msra.mxu0 0
        %1399 = vmatprep.subr.bf16.mxu0 0
        %1400 = vmatpush1.bf16.msra.mxu0 0
        %1401 = vmatprep.subr.bf16.mxu0 0
        %1402 = vmatpush1.bf16.msra.mxu0 0
        %1403 = vmatprep.subr.bf16.mxu0 0
        %1404 = vmatpush1.bf16.msra.mxu0 0
        %1405 = vmatprep.subr.bf16.mxu0 0
        %1406 = vmatpush1.bf16.msra.mxu0 0
        %1407 = vmatprep.subr.bf16.mxu0 0
        %1408 = vmatpush1.bf16.msra.mxu0 0
        %1409 = vmatprep.subr.bf16.mxu0 0
        %1410 = vmatpush1.bf16.msra.mxu0 0
        %1411 = vmatprep.subr.bf16.mxu0 0
        %1412 = vmatpush1.bf16.msra.mxu0 0
        %1413 = vmatprep.subr.bf16.mxu0 0
        %1414 = vmatpush1.bf16.msra.mxu0 0
        %1415 = vmatprep.mubr.bf16.mxu0 0
        %1416 = vmatmul.mubr.bf16.gmra.mrb[0].mxu0 %v522
        %v1417 = vpop.f32.mrb[0].mxu0
        %v1418 = vadd.f32 0.0, %v1417
        %v1419 = vpop.f32.mrb[0].mxu0
        %v1420 = vpop.f32.mrb[0].mxu0
        %v1421 = vadd.f32 0.0, %v1420
        %v1422 = vpop.f32.mrb[0].mxu0
        %1423 = vdwg.mxu0
        %v1424 = vpack.c.bf16 %v1421, %v1418
        %s1425 = scalar_lea.vmem %s3, 64
        %v1426 = vld [vmem:[%s1425] sm:$0xf]
        %v1427 = vld [vmem:[%s1425 + $0x4] sm:$0xf]
        %v1428 = vld [vmem:[%s1425 + $0x8] sm:$0xf]
        %v1429 = vld [vmem:[%s1425 + $0xc] sm:$0xf]
        %v1430 = vld [vmem:[%s1425 + $0x10] sm:$0xf]
        %v1431 = vld [vmem:[%s1425 + $0x14] sm:$0xf]
        %v1432 = vld [vmem:[%s1425 + $0x18] sm:$0xf]
        %v1433 = vld [vmem:[%s1425 + $0x1c] sm:$0xf]
        %v1442 = vunpack.c.l.b16 %v1426
        %v1443 = vunpack.c.l.b16 %v1427
        %v1444 = vunpack.c.l.b16 %v1428
        %v1445 = vunpack.c.l.b16 %v1429
        %v1446 = vunpack.c.l.b16 %v1430
        %v1447 = vunpack.c.l.b16 %v1431
        %v1448 = vunpack.c.l.b16 %v1432
        %v1449 = vunpack.c.l.b16 %v1433
        %v1450 = vpack.c.b16 %v1443, %v1442
        %v1451 = vpack.c.b16 %v1445, %v1444
        %v1452 = vpack.c.b16 %v1447, %v1446
        %v1453 = vpack.c.b16 %v1449, %v1448
        %1458 = vmatprep.subr.bf16.mxu0 0
        %1459 = vmatpush1.bf16.msra.mxu0 %v1450
        %1460 = vmatprep.subr.bf16.mxu0 0
        %1461 = vmatpush1.bf16.msra.mxu0 %v1451
        %1462 = vmatprep.subr.bf16.mxu0 0
        %1463 = vmatpush1.bf16.msra.mxu0 %v1452
        %1464 = vmatprep.subr.bf16.mxu0 0
        %1465 = vmatpush1.bf16.msra.mxu0 %v1453
        %1466 = vmatprep.subr.bf16.mxu0 0
        %1467 = vmatpush1.bf16.msra.mxu0 0
        %1468 = vmatprep.subr.bf16.mxu0 0
        %1469 = vmatpush1.bf16.msra.mxu0 0
        %1470 = vmatprep.subr.bf16.mxu0 0
        %1471 = vmatpush1.bf16.msra.mxu0 0
        %1472 = vmatprep.subr.bf16.mxu0 0
        %1473 = vmatpush1.bf16.msra.mxu0 0
        %1474 = vmatprep.subr.bf16.mxu0 0
        %1475 = vmatpush1.bf16.msra.mxu0 0
        %1476 = vmatprep.subr.bf16.mxu0 0
        %1477 = vmatpush1.bf16.msra.mxu0 0
        %1478 = vmatprep.subr.bf16.mxu0 0
        %1479 = vmatpush1.bf16.msra.mxu0 0
        %1480 = vmatprep.subr.bf16.mxu0 0
        %1481 = vmatpush1.bf16.msra.mxu0 0
        %1482 = vmatprep.subr.bf16.mxu0 0
        %1483 = vmatpush1.bf16.msra.mxu0 0
        %1484 = vmatprep.subr.bf16.mxu0 0
        %1485 = vmatpush1.bf16.msra.mxu0 0
        %1486 = vmatprep.subr.bf16.mxu0 0
        %1487 = vmatpush1.bf16.msra.mxu0 0
        %1488 = vmatprep.subr.bf16.mxu0 0
        %1489 = vmatpush1.bf16.msra.mxu0 0
        %1490 = vmatprep.mubr.bf16.mxu0 0
        %1491 = vmatmul.mubr.bf16.gmra.mrb[0].mxu0 %v522
        %v1492 = vpop.f32.mrb[0].mxu0
        %v1493 = vadd.f32 0.0, %v1492
        %v1494 = vpop.f32.mrb[0].mxu0
        %v1495 = vpop.f32.mrb[0].mxu0
        %v1496 = vadd.f32 0.0, %v1495
        %v1497 = vpop.f32.mrb[0].mxu0
        %1498 = vdwg.mxu0
        %v1499 = vpack.c.bf16 %v1496, %v1493
        %v1501 = vsel %vm714, %v1349, 0
        %v1504 = vsel %vm714, %v1424, 0
        %1506 = vmatprep.subr.bf16.mxu0 0
        %1507 = vmatpush1.bf16.xpose.msra.mxu0 %v1504
        %1508 = vmatprep.subr.bf16.mxu0 0
        %1509 = vmatpush1.bf16.xpose.msra.mxu0 0
        %1510 = vmatprep.subr.bf16.mxu0 0
        %1511 = vmatpush1.bf16.xpose.msra.mxu0 0
        %1512 = vmatprep.subr.bf16.mxu0 0
        %1513 = vmatpush1.bf16.xpose.msra.mxu0 0
        %1514 = vmatprep.subr.bf16.mxu0 0
        %1515 = vmatpush1.bf16.xpose.msra.mxu0 0
        %1516 = vmatprep.subr.bf16.mxu0 0
        %1517 = vmatpush1.bf16.xpose.msra.mxu0 0
        %1518 = vmatprep.subr.bf16.mxu0 0
        %1519 = vmatpush1.bf16.xpose.msra.mxu0 0
        %1520 = vmatprep.subr.bf16.mxu0 0
        %1521 = vmatpush1.bf16.xpose.msra.mxu0 0
        %1522 = vmatprep.subr.bf16.mxu0 0
        %1523 = vmatpush1.bf16.xpose.msra.mxu0 0
        %1524 = vmatprep.subr.bf16.mxu0 0
        %1525 = vmatpush1.bf16.xpose.msra.mxu0 0
        %1526 = vmatprep.subr.bf16.mxu0 0
        %1527 = vmatpush1.bf16.xpose.msra.mxu0 0
        %1528 = vmatprep.subr.bf16.mxu0 0
        %1529 = vmatpush1.bf16.xpose.msra.mxu0 0
        %1530 = vmatprep.subr.bf16.mxu0 0
        %1531 = vmatpush1.bf16.xpose.msra.mxu0 0
        %1532 = vmatprep.subr.bf16.mxu0 0
        %1533 = vmatpush1.bf16.xpose.msra.mxu0 0
        %1534 = vmatprep.subr.bf16.mxu0 0
        %1535 = vmatpush1.bf16.xpose.msra.mxu0 0
        %1536 = vmatprep.subr.bf16.mxu0 0
        %1537 = vmatpush1.bf16.xpose.msra.mxu0 0
        %1538 = vmatprep.mubr.bf16.mxu0 0
        %1539 = vmatmul.mubr.bf16.gmra.mrb[0].mxu0 %v1501
        %v1540 = vpop.f32.mrb[0].mxu0
        %v1541 = vadd.f32 0.0, %v1540
        %v1542 = vpop.f32.mrb[0].mxu0
        %v1543 = vpop.f32.mrb[0].mxu0
        %v1544 = vadd.f32 0.0, %v1543
        %v1545 = vpop.f32.mrb[0].mxu0
        %1546 = vdwg.mxu0
        %v1547 = vsel %vm714, %v1541, -inf
        %1548 = vmax.xlane.f32.xlu0 %v1547
        %v1549 = vpop.xlane.xlu0 %1548
        %v1550 = vsel %vm714, %v1544, -inf
        %1551 = vmax.xlane.f32.xlu0 %v1550
        %v1552 = vpop.xlane.xlu0 %1551
        %v1553 = vsub.f32 %v1541, %v1549
        %v1554 = vsub.f32 %v1544, %v1552
        %v1555 = vmul.f32 %v1553, 1.442695
        %v1556 = vpow.pop %v1555
        %v1557 = vmul.f32 %v1554, 1.442695
        %v1558 = vpow.pop %v1557
        %v1559 = vsel %vm714, %v1556, 0.0
        %1560 = vadd.xlane.f32.xlu0 %v1559
        %v1561 = vpop.xlane.xlu0 %1560
        %v1562 = vsel %vm714, %v1558, 0.0
        %1563 = vadd.xlane.f32.xlu0 %v1562
        %v1564 = vpop.xlane.xlu0 %1563
        %v1565 = vrcp.pop %v1561
        %v1566 = vrcp.pop %v1564
        %v1567 = vmul.f32 %v1556, %v1565
        %v1568 = vmul.f32 %v1558, %v1566
        %v1569 = vpack.c.bf16 %v1568, %v1567
        %v1571 = vsel %vm714, %v1569, 0
        %1573 = vmatprep.subr.bf16.mxu0 0
        %1574 = vmatpush1.bf16.msra.mxu0 %v1499
        %1575 = vmatprep.subr.bf16.mxu0 0
        %1576 = vmatpush1.bf16.msra.mxu0 0
        %1577 = vmatprep.subr.bf16.mxu0 0
        %1578 = vmatpush1.bf16.msra.mxu0 0
        %1579 = vmatprep.subr.bf16.mxu0 0
        %1580 = vmatpush1.bf16.msra.mxu0 0
        %1581 = vmatprep.subr.bf16.mxu0 0
        %1582 = vmatpush1.bf16.msra.mxu0 0
        %1583 = vmatprep.subr.bf16.mxu0 0
        %1584 = vmatpush1.bf16.msra.mxu0 0
        %1585 = vmatprep.subr.bf16.mxu0 0
        %1586 = vmatpush1.bf16.msra.mxu0 0
        %1587 = vmatprep.subr.bf16.mxu0 0
        %1588 = vmatpush1.bf16.msra.mxu0 0
        %1589 = vmatprep.subr.bf16.mxu0 0
        %1590 = vmatpush1.bf16.msra.mxu0 0
        %1591 = vmatprep.subr.bf16.mxu0 0
        %1592 = vmatpush1.bf16.msra.mxu0 0
        %1593 = vmatprep.subr.bf16.mxu0 0
        %1594 = vmatpush1.bf16.msra.mxu0 0
        %1595 = vmatprep.subr.bf16.mxu0 0
        %1596 = vmatpush1.bf16.msra.mxu0 0
        %1597 = vmatprep.subr.bf16.mxu0 0
        %1598 = vmatpush1.bf16.msra.mxu0 0
        %1599 = vmatprep.subr.bf16.mxu0 0
        %1600 = vmatpush1.bf16.msra.mxu0 0
        %1601 = vmatprep.subr.bf16.mxu0 0
        %1602 = vmatpush1.bf16.msra.mxu0 0
        %1603 = vmatprep.subr.bf16.mxu0 0
        %1604 = vmatpush1.bf16.msra.mxu0 0
        %1605 = vmatprep.mubr.bf16.mxu0 0
        %1606 = vmatmul.mubr.bf16.gmra.mrb[0].mxu0 %v1571
        %v1607 = vpop.f32.mrb[0].mxu0
        %v1608 = vadd.f32 0.0, %v1607
        %v1609 = vpop.f32.mrb[0].mxu0
        %v1610 = vpop.f32.mrb[0].mxu0
        %v1611 = vadd.f32 0.0, %v1610
        %v1612 = vpop.f32.mrb[0].mxu0
        %1613 = vdwg.mxu0
        %v1614 = vpack.c.bf16 %v1611, %v1608
        %s1615 = scalar_lea.vmem %s4, 16
        %v1616 = vld [vmem:[%s1615] sm:$0xf]
        %v1617 = vld [vmem:[%s1615 + $0x4] sm:$0xf]
        %v1620 = vunpack.c.l.b16 %v1616
        %v1621 = vunpack.c.l.b16 %v1617
        %v1622 = vpack.c.b16 %v1621, %v1620
        %v1625 = vsel %vm714, %v1614, 0
        %1627 = vmatprep.subr.bf16.mxu0 0
        %1628 = vmatpush1.bf16.msra.mxu0 %v1622
        %1629 = vmatprep.subr.bf16.mxu0 0
        %1630 = vmatpush1.bf16.msra.mxu0 0
        %1631 = vmatprep.subr.bf16.mxu0 0
        %1632 = vmatpush1.bf16.msra.mxu0 0
        %1633 = vmatprep.subr.bf16.mxu0 0
        %1634 = vmatpush1.bf16.msra.mxu0 0
        %1635 = vmatprep.subr.bf16.mxu0 0
        %1636 = vmatpush1.bf16.msra.mxu0 0
        %1637 = vmatprep.subr.bf16.mxu0 0
        %1638 = vmatpush1.bf16.msra.mxu0 0
        %1639 = vmatprep.subr.bf16.mxu0 0
        %1640 = vmatpush1.bf16.msra.mxu0 0
        %1641 = vmatprep.subr.bf16.mxu0 0
        %1642 = vmatpush1.bf16.msra.mxu0 0
        %1643 = vmatprep.subr.bf16.mxu0 0
        %1644 = vmatpush1.bf16.msra.mxu0 0
        %1645 = vmatprep.subr.bf16.mxu0 0
        %1646 = vmatpush1.bf16.msra.mxu0 0
        %1647 = vmatprep.subr.bf16.mxu0 0
        %1648 = vmatpush1.bf16.msra.mxu0 0
        %1649 = vmatprep.subr.bf16.mxu0 0
        %1650 = vmatpush1.bf16.msra.mxu0 0
        %1651 = vmatprep.subr.bf16.mxu0 0
        %1652 = vmatpush1.bf16.msra.mxu0 0
        %1653 = vmatprep.subr.bf16.mxu0 0
        %1654 = vmatpush1.bf16.msra.mxu0 0
        %1655 = vmatprep.subr.bf16.mxu0 0
        %1656 = vmatpush1.bf16.msra.mxu0 0
        %1657 = vmatprep.subr.bf16.mxu0 0
        %1658 = vmatpush1.bf16.msra.mxu0 0
        %1659 = vmatprep.mubr.bf16.mxu0 0
        %1660 = vmatmul.mubr.bf16.gmra.mrb[0].mxu0 %v1625
        %v1661 = vpop.f32.mrb[0].mxu0
        %v1662 = vadd.f32 0.0, %v1661
        %v1663 = vpop.f32.mrb[0].mxu0
        %v1664 = vpop.f32.mrb[0].mxu0
        %v1665 = vadd.f32 0.0, %v1664
        %v1666 = vpop.f32.mrb[0].mxu0
        %1667 = vdwg.mxu0
        %v1668 = vadd.f32 %v1269, %v1662
        %v1669 = vadd.f32 %v1272, %v1665
        %s1670 = scalar_lea.vmem %s1, 96
        %v1671 = vld [vmem:[%s1670] sm:$0xf]
        %v1672 = vld [vmem:[%s1670 + $0x4] sm:$0xf]
        %v1673 = vld [vmem:[%s1670 + $0x8] sm:$0xf]
        %v1674 = vld [vmem:[%s1670 + $0xc] sm:$0xf]
        %v1675 = vld [vmem:[%s1670 + $0x10] sm:$0xf]
        %v1676 = vld [vmem:[%s1670 + $0x14] sm:$0xf]
        %v1677 = vld [vmem:[%s1670 + $0x18] sm:$0xf]
        %v1678 = vld [vmem:[%s1670 + $0x1c] sm:$0xf]
        %v1687 = vunpack.c.l.b16 %v1671
        %v1688 = vunpack.c.l.b16 %v1672
        %v1689 = vunpack.c.l.b16 %v1673
        %v1690 = vunpack.c.l.b16 %v1674
        %v1691 = vunpack.c.l.b16 %v1675
        %v1692 = vunpack.c.l.b16 %v1676
        %v1693 = vunpack.c.l.b16 %v1677
        %v1694 = vunpack.c.l.b16 %v1678
        %v1695 = vpack.c.b16 %v1688, %v1687
        %v1696 = vpack.c.b16 %v1690, %v1689
        %v1697 = vpack.c.b16 %v1692, %v1691
        %v1698 = vpack.c.b16 %v1694, %v1693
        %1703 = vmatprep.subr.bf16.mxu0 0
        %1704 = vmatpush1.bf16.msra.mxu0 %v1695
        %1705 = vmatprep.subr.bf16.mxu0 0
        %1706 = vmatpush1.bf16.msra.mxu0 %v1696
        %1707 = vmatprep.subr.bf16.mxu0 0
        %1708 = vmatpush1.bf16.msra.mxu0 %v1697
        %1709 = vmatprep.subr.bf16.mxu0 0
        %1710 = vmatpush1.bf16.msra.mxu0 %v1698
        %1711 = vmatprep.subr.bf16.mxu0 0
        %1712 = vmatpush1.bf16.msra.mxu0 0
        %1713 = vmatprep.subr.bf16.mxu0 0
        %1714 = vmatpush1.bf16.msra.mxu0 0
        %1715 = vmatprep.subr.bf16.mxu0 0
        %1716 = vmatpush1.bf16.msra.mxu0 0
        %1717 = vmatprep.subr.bf16.mxu0 0
        %1718 = vmatpush1.bf16.msra.mxu0 0
        %1719 = vmatprep.subr.bf16.mxu0 0
        %1720 = vmatpush1.bf16.msra.mxu0 0
        %1721 = vmatprep.subr.bf16.mxu0 0
        %1722 = vmatpush1.bf16.msra.mxu0 0
        %1723 = vmatprep.subr.bf16.mxu0 0
        %1724 = vmatpush1.bf16.msra.mxu0 0
        %1725 = vmatprep.subr.bf16.mxu0 0
        %1726 = vmatpush1.bf16.msra.mxu0 0
        %1727 = vmatprep.subr.bf16.mxu0 0
        %1728 = vmatpush1.bf16.msra.mxu0 0
        %1729 = vmatprep.subr.bf16.mxu0 0
        %1730 = vmatpush1.bf16.msra.mxu0 0
        %1731 = vmatprep.subr.bf16.mxu0 0
        %1732 = vmatpush1.bf16.msra.mxu0 0
        %1733 = vmatprep.subr.bf16.mxu0 0
        %1734 = vmatpush1.bf16.msra.mxu0 0
        %1735 = vmatprep.mubr.bf16.mxu0 0
        %1736 = vmatmul.mubr.bf16.gmra.mrb[0].mxu0 %v522
        %v1737 = vpop.f32.mrb[0].mxu0
        %v1738 = vadd.f32 0.0, %v1737
        %v1739 = vpop.f32.mrb[0].mxu0
        %v1740 = vpop.f32.mrb[0].mxu0
        %v1741 = vadd.f32 0.0, %v1740
        %v1742 = vpop.f32.mrb[0].mxu0
        %1743 = vdwg.mxu0
        %v1744 = vpack.c.bf16 %v1741, %v1738
        %s1745 = scalar_lea.vmem %s2, 96
        %v1746 = vld [vmem:[%s1745] sm:$0xf]
        %v1747 = vld [vmem:[%s1745 + $0x4] sm:$0xf]
        %v1748 = vld [vmem:[%s1745 + $0x8] sm:$0xf]
        %v1749 = vld [vmem:[%s1745 + $0xc] sm:$0xf]
        %v1750 = vld [vmem:[%s1745 + $0x10] sm:$0xf]
        %v1751 = vld [vmem:[%s1745 + $0x14] sm:$0xf]
        %v1752 = vld [vmem:[%s1745 + $0x18] sm:$0xf]
        %v1753 = vld [vmem:[%s1745 + $0x1c] sm:$0xf]
        %v1762 = vunpack.c.l.b16 %v1746
        %v1763 = vunpack.c.l.b16 %v1747
        %v1764 = vunpack.c.l.b16 %v1748
        %v1765 = vunpack.c.l.b16 %v1749
        %v1766 = vunpack.c.l.b16 %v1750
        %v1767 = vunpack.c.l.b16 %v1751
        %v1768 = vunpack.c.l.b16 %v1752
        %v1769 = vunpack.c.l.b16 %v1753
        %v1770 = vpack.c.b16 %v1763, %v1762
        %v1771 = vpack.c.b16 %v1765, %v1764
        %v1772 = vpack.c.b16 %v1767, %v1766
        %v1773 = vpack.c.b16 %v1769, %v1768
        %1778 = vmatprep.subr.bf16.mxu0 0
        %1779 = vmatpush1.bf16.msra.mxu0 %v1770
        %1780 = vmatprep.subr.bf16.mxu0 0
        %1781 = vmatpush1.bf16.msra.mxu0 %v1771
        %1782 = vmatprep.subr.bf16.mxu0 0
        %1783 = vmatpush1.bf16.msra.mxu0 %v1772
        %1784 = vmatprep.subr.bf16.mxu0 0
        %1785 = vmatpush1.bf16.msra.mxu0 %v1773
        %1786 = vmatprep.subr.bf16.mxu0 0
        %1787 = vmatpush1.bf16.msra.mxu0 0
        %1788 = vmatprep.subr.bf16.mxu0 0
        %1789 = vmatpush1.bf16.msra.mxu0 0
        %1790 = vmatprep.subr.bf16.mxu0 0
        %1791 = vmatpush1.bf16.msra.mxu0 0
        %1792 = vmatprep.subr.bf16.mxu0 0
        %1793 = vmatpush1.bf16.msra.mxu0 0
        %1794 = vmatprep.subr.bf16.mxu0 0
        %1795 = vmatpush1.bf16.msra.mxu0 0
        %1796 = vmatprep.subr.bf16.mxu0 0
        %1797 = vmatpush1.bf16.msra.mxu0 0
        %1798 = vmatprep.subr.bf16.mxu0 0
        %1799 = vmatpush1.bf16.msra.mxu0 0
        %1800 = vmatprep.subr.bf16.mxu0 0
        %1801 = vmatpush1.bf16.msra.mxu0 0
        %1802 = vmatprep.subr.bf16.mxu0 0
        %1803 = vmatpush1.bf16.msra.mxu0 0
        %1804 = vmatprep.subr.bf16.mxu0 0
        %1805 = vmatpush1.bf16.msra.mxu0 0
        %1806 = vmatprep.subr.bf16.mxu0 0
        %1807 = vmatpush1.bf16.msra.mxu0 0
        %1808 = vmatprep.subr.bf16.mxu0 0
        %1809 = vmatpush1.bf16.msra.mxu0 0
        %1810 = vmatprep.mubr.bf16.mxu0 0
        %1811 = vmatmul.mubr.bf16.gmra.mrb[0].mxu0 %v522
        %v1812 = vpop.f32.mrb[0].mxu0
        %v1813 = vadd.f32 0.0, %v1812
        %v1814 = vpop.f32.mrb[0].mxu0
        %v1815 = vpop.f32.mrb[0].mxu0
        %v1816 = vadd.f32 0.0, %v1815
        %v1817 = vpop.f32.mrb[0].mxu0
        %1818 = vdwg.mxu0
        %v1819 = vpack.c.bf16 %v1816, %v1813
        %s1820 = scalar_lea.vmem %s3, 96
        %v1821 = vld [vmem:[%s1820] sm:$0xf]
        %v1822 = vld [vmem:[%s1820 + $0x4] sm:$0xf]
        %v1823 = vld [vmem:[%s1820 + $0x8] sm:$0xf]
        %v1824 = vld [vmem:[%s1820 + $0xc] sm:$0xf]
        %v1825 = vld [vmem:[%s1820 + $0x10] sm:$0xf]
        %v1826 = vld [vmem:[%s1820 + $0x14] sm:$0xf]
        %v1827 = vld [vmem:[%s1820 + $0x18] sm:$0xf]
        %v1828 = vld [vmem:[%s1820 + $0x1c] sm:$0xf]
        %v1837 = vunpack.c.l.b16 %v1821
        %v1838 = vunpack.c.l.b16 %v1822
        %v1839 = vunpack.c.l.b16 %v1823
        %v1840 = vunpack.c.l.b16 %v1824
        %v1841 = vunpack.c.l.b16 %v1825
        %v1842 = vunpack.c.l.b16 %v1826
        %v1843 = vunpack.c.l.b16 %v1827
        %v1844 = vunpack.c.l.b16 %v1828
        %v1845 = vpack.c.b16 %v1838, %v1837
        %v1846 = vpack.c.b16 %v1840, %v1839
        %v1847 = vpack.c.b16 %v1842, %v1841
        %v1848 = vpack.c.b16 %v1844, %v1843
        %1853 = vmatprep.subr.bf16.mxu0 0
        %1854 = vmatpush1.bf16.msra.mxu0 %v1845
        %1855 = vmatprep.subr.bf16.mxu0 0
        %1856 = vmatpush1.bf16.msra.mxu0 %v1846
        %1857 = vmatprep.subr.bf16.mxu0 0
        %1858 = vmatpush1.bf16.msra.mxu0 %v1847
        %1859 = vmatprep.subr.bf16.mxu0 0
        %1860 = vmatpush1.bf16.msra.mxu0 %v1848
        %1861 = vmatprep.subr.bf16.mxu0 0
        %1862 = vmatpush1.bf16.msra.mxu0 0
        %1863 = vmatprep.subr.bf16.mxu0 0
        %1864 = vmatpush1.bf16.msra.mxu0 0
        %1865 = vmatprep.subr.bf16.mxu0 0
        %1866 = vmatpush1.bf16.msra.mxu0 0
        %1867 = vmatprep.subr.bf16.mxu0 0
        %1868 = vmatpush1.bf16.msra.mxu0 0
        %1869 = vmatprep.subr.bf16.mxu0 0
        %1870 = vmatpush1.bf16.msra.mxu0 0
        %1871 = vmatprep.subr.bf16.mxu0 0
        %1872 = vmatpush1.bf16.msra.mxu0 0
        %1873 = vmatprep.subr.bf16.mxu0 0
        %1874 = vmatpush1.bf16.msra.mxu0 0
        %1875 = vmatprep.subr.bf16.mxu0 0
        %1876 = vmatpush1.bf16.msra.mxu0 0
        %1877 = vmatprep.subr.bf16.mxu0 0
        %1878 = vmatpush1.bf16.msra.mxu0 0
        %1879 = vmatprep.subr.bf16.mxu0 0
        %1880 = vmatpush1.bf16.msra.mxu0 0
        %1881 = vmatprep.subr.bf16.mxu0 0
        %1882 = vmatpush1.bf16.msra.mxu0 0
        %1883 = vmatprep.subr.bf16.mxu0 0
        %1884 = vmatpush1.bf16.msra.mxu0 0
        %1885 = vmatprep.mubr.bf16.mxu0 0
        %1886 = vmatmul.mubr.bf16.gmra.mrb[0].mxu0 %v522
        %v1887 = vpop.f32.mrb[0].mxu0
        %v1888 = vadd.f32 0.0, %v1887
        %v1889 = vpop.f32.mrb[0].mxu0
        %v1890 = vpop.f32.mrb[0].mxu0
        %v1891 = vadd.f32 0.0, %v1890
        %v1892 = vpop.f32.mrb[0].mxu0
        %1893 = vdwg.mxu0
        %v1894 = vpack.c.bf16 %v1891, %v1888
        %v1896 = vsel %vm714, %v1744, 0
        %v1899 = vsel %vm714, %v1819, 0
        %1901 = vmatprep.subr.bf16.mxu0 0
        %1902 = vmatpush1.bf16.xpose.msra.mxu0 %v1899
        %1903 = vmatprep.subr.bf16.mxu0 0
        %1904 = vmatpush1.bf16.xpose.msra.mxu0 0
        %1905 = vmatprep.subr.bf16.mxu0 0
        %1906 = vmatpush1.bf16.xpose.msra.mxu0 0
        %1907 = vmatprep.subr.bf16.mxu0 0
        %1908 = vmatpush1.bf16.xpose.msra.mxu0 0
        %1909 = vmatprep.subr.bf16.mxu0 0
        %1910 = vmatpush1.bf16.xpose.msra.mxu0 0
        %1911 = vmatprep.subr.bf16.mxu0 0
        %1912 = vmatpush1.bf16.xpose.msra.mxu0 0
        %1913 = vmatprep.subr.bf16.mxu0 0
        %1914 = vmatpush1.bf16.xpose.msra.mxu0 0
        %1915 = vmatprep.subr.bf16.mxu0 0
        %1916 = vmatpush1.bf16.xpose.msra.mxu0 0
        %1917 = vmatprep.subr.bf16.mxu0 0
        %1918 = vmatpush1.bf16.xpose.msra.mxu0 0
        %1919 = vmatprep.subr.bf16.mxu0 0
        %1920 = vmatpush1.bf16.xpose.msra.mxu0 0
        %1921 = vmatprep.subr.bf16.mxu0 0
        %1922 = vmatpush1.bf16.xpose.msra.mxu0 0
        %1923 = vmatprep.subr.bf16.mxu0 0
        %1924 = vmatpush1.bf16.xpose.msra.mxu0 0
        %1925 = vmatprep.subr.bf16.mxu0 0
        %1926 = vmatpush1.bf16.xpose.msra.mxu0 0
        %1927 = vmatprep.subr.bf16.mxu0 0
        %1928 = vmatpush1.bf16.xpose.msra.mxu0 0
        %1929 = vmatprep.subr.bf16.mxu0 0
        %1930 = vmatpush1.bf16.xpose.msra.mxu0 0
        %1931 = vmatprep.subr.bf16.mxu0 0
        %1932 = vmatpush1.bf16.xpose.msra.mxu0 0
        %1933 = vmatprep.mubr.bf16.mxu0 0
        %1934 = vmatmul.mubr.bf16.gmra.mrb[0].mxu0 %v1896
        %v1935 = vpop.f32.mrb[0].mxu0
        %v1936 = vadd.f32 0.0, %v1935
        %v1937 = vpop.f32.mrb[0].mxu0
        %v1938 = vpop.f32.mrb[0].mxu0
        %v1939 = vadd.f32 0.0, %v1938
        %v1940 = vpop.f32.mrb[0].mxu0
        %1941 = vdwg.mxu0
        %v1942 = vsel %vm714, %v1936, -inf
        %1943 = vmax.xlane.f32.xlu0 %v1942
        %v1944 = vpop.xlane.xlu0 %1943
        %v1945 = vsel %vm714, %v1939, -inf
        %1946 = vmax.xlane.f32.xlu0 %v1945
        %v1947 = vpop.xlane.xlu0 %1946
        %v1948 = vsub.f32 %v1936, %v1944
        %v1949 = vsub.f32 %v1939, %v1947
        %v1950 = vmul.f32 %v1948, 1.442695
        %v1951 = vpow.pop %v1950
        %v1952 = vmul.f32 %v1949, 1.442695
        %v1953 = vpow.pop %v1952
        %v1954 = vsel %vm714, %v1951, 0.0
        %1955 = vadd.xlane.f32.xlu0 %v1954
        %v1956 = vpop.xlane.xlu0 %1955
        %v1957 = vsel %vm714, %v1953, 0.0
        %1958 = vadd.xlane.f32.xlu0 %v1957
        %v1959 = vpop.xlane.xlu0 %1958
        %v1960 = vrcp.pop %v1956
        %v1961 = vrcp.pop %v1959
        %v1962 = vmul.f32 %v1951, %v1960
        %v1963 = vmul.f32 %v1953, %v1961
        %v1964 = vpack.c.bf16 %v1963, %v1962
        %v1966 = vsel %vm714, %v1964, 0
        %1968 = vmatprep.subr.bf16.mxu0 0
        %1969 = vmatpush1.bf16.msra.mxu0 %v1894
        %1970 = vmatprep.subr.bf16.mxu0 0
        %1971 = vmatpush1.bf16.msra.mxu0 0
        %1972 = vmatprep.subr.bf16.mxu0 0
        %1973 = vmatpush1.bf16.msra.mxu0 0
        %1974 = vmatprep.subr.bf16.mxu0 0
        %1975 = vmatpush1.bf16.msra.mxu0 0
        %1976 = vmatprep.subr.bf16.mxu0 0
        %1977 = vmatpush1.bf16.msra.mxu0 0
        %1978 = vmatprep.subr.bf16.mxu0 0
        %1979 = vmatpush1.bf16.msra.mxu0 0
        %1980 = vmatprep.subr.bf16.mxu0 0
        %1981 = vmatpush1.bf16.msra.mxu0 0
        %1982 = vmatprep.subr.bf16.mxu0 0
        %1983 = vmatpush1.bf16.msra.mxu0 0
        %1984 = vmatprep.subr.bf16.mxu0 0
        %1985 = vmatpush1.bf16.msra.mxu0 0
        %1986 = vmatprep.subr.bf16.mxu0 0
        %1987 = vmatpush1.bf16.msra.mxu0 0
        %1988 = vmatprep.subr.bf16.mxu0 0
        %1989 = vmatpush1.bf16.msra.mxu0 0
        %1990 = vmatprep.subr.bf16.mxu0 0
        %1991 = vmatpush1.bf16.msra.mxu0 0
        %1992 = vmatprep.subr.bf16.mxu0 0
        %1993 = vmatpush1.bf16.msra.mxu0 0
        %1994 = vmatprep.subr.bf16.mxu0 0
        %1995 = vmatpush1.bf16.msra.mxu0 0
        %1996 = vmatprep.subr.bf16.mxu0 0
        %1997 = vmatpush1.bf16.msra.mxu0 0
        %1998 = vmatprep.subr.bf16.mxu0 0
        %1999 = vmatpush1.bf16.msra.mxu0 0
        %2000 = vmatprep.mubr.bf16.mxu0 0
        %2001 = vmatmul.mubr.bf16.gmra.mrb[0].mxu0 %v1966
        %v2002 = vpop.f32.mrb[0].mxu0
        %v2003 = vadd.f32 0.0, %v2002
        %v2004 = vpop.f32.mrb[0].mxu0
        %v2005 = vpop.f32.mrb[0].mxu0
        %v2006 = vadd.f32 0.0, %v2005
        %v2007 = vpop.f32.mrb[0].mxu0
        %2008 = vdwg.mxu0
        %v2009 = vpack.c.bf16 %v2006, %v2003
        %s2010 = scalar_lea.vmem %s4, 24
        %v2011 = vld [vmem:[%s2010] sm:$0xf]
        %v2012 = vld [vmem:[%s2010 + $0x4] sm:$0xf]
        %v2015 = vunpack.c.l.b16 %v2011
        %v2016 = vunpack.c.l.b16 %v2012
        %v2017 = vpack.c.b16 %v2016, %v2015
        %v2020 = vsel %vm714, %v2009, 0
        %2022 = vmatprep.subr.bf16.mxu0 0
        %2023 = vmatpush1.bf16.msra.mxu0 %v2017
        %2024 = vmatprep.subr.bf16.mxu0 0
        %2025 = vmatpush1.bf16.msra.mxu0 0
        %2026 = vmatprep.subr.bf16.mxu0 0
        %2027 = vmatpush1.bf16.msra.mxu0 0
        %2028 = vmatprep.subr.bf16.mxu0 0
        %2029 = vmatpush1.bf16.msra.mxu0 0
        %2030 = vmatprep.subr.bf16.mxu0 0
        %2031 = vmatpush1.bf16.msra.mxu0 0
        %2032 = vmatprep.subr.bf16.mxu0 0
        %2033 = vmatpush1.bf16.msra.mxu0 0
        %2034 = vmatprep.subr.bf16.mxu0 0
        %2035 = vmatpush1.bf16.msra.mxu0 0
        %2036 = vmatprep.subr.bf16.mxu0 0
        %2037 = vmatpush1.bf16.msra.mxu0 0
        %2038 = vmatprep.subr.bf16.mxu0 0
        %2039 = vmatpush1.bf16.msra.mxu0 0
        %2040 = vmatprep.subr.bf16.mxu0 0
        %2041 = vmatpush1.bf16.msra.mxu0 0
        %2042 = vmatprep.subr.bf16.mxu0 0
        %2043 = vmatpush1.bf16.msra.mxu0 0
        %2044 = vmatprep.subr.bf16.mxu0 0
        %2045 = vmatpush1.bf16.msra.mxu0 0
        %2046 = vmatprep.subr.bf16.mxu0 0
        %2047 = vmatpush1.bf16.msra.mxu0 0
        %2048 = vmatprep.subr.bf16.mxu0 0
        %2049 = vmatpush1.bf16.msra.mxu0 0
        %2050 = vmatprep.subr.bf16.mxu0 0
        %2051 = vmatpush1.bf16.msra.mxu0 0
        %2052 = vmatprep.subr.bf16.mxu0 0
        %2053 = vmatpush1.bf16.msra.mxu0 0
        %2054 = vmatprep.mubr.bf16.mxu0 0
        %2055 = vmatmul.mubr.bf16.gmra.mrb[0].mxu0 %v2020
        %v2056 = vpop.f32.mrb[0].mxu0
        %v2057 = vadd.f32 0.0, %v2056
        %v2058 = vpop.f32.mrb[0].mxu0
        %v2059 = vpop.f32.mrb[0].mxu0
        %v2060 = vadd.f32 0.0, %v2059
        %v2061 = vpop.f32.mrb[0].mxu0
        %2062 = vdwg.mxu0
        %v2063 = vadd.f32 %v1668, %v2057
        %v2064 = vadd.f32 %v1669, %v2060
        %v2065 = vadd.f32 %v440, %v2063
        %v2066 = vadd.f32 %v441, %v2064
        %v2067 = vld [vmem:[%s11] sm:$0x1]
        %v2068 = vld [vmem:[%s12] sm:$0x1]
        %v2069 = vsel %vm444, %v2065, 0.0
        %2070 = vadd.xlane.f32.xlu0 %v2069
        %v2071 = vpop.xlane.xlu0 %2070
        %v2072 = vsel %vm444, %v2066, 0.0
        %2073 = vadd.xlane.f32.xlu0 %v2072
        %v2074 = vpop.xlane.xlu0 %2073
        %v2075 = vmul.f32 %v2071, %v451
        %v2076 = vmul.f32 %v2074, %v451
        %v2077 = vsub.f32 %v2065, %v2075
        %v2078 = vsub.f32 %v2066, %v2076
        %v2079 = vmul.f32 %v2077, %v2077
        %v2080 = vmul.f32 %v2078, %v2078
        %v2081 = vsel %vm444, %v2079, 0.0
        %2082 = vadd.xlane.f32.xlu0 %v2081
        %v2083 = vpop.xlane.xlu0 %2082
        %v2084 = vsel %vm444, %v2080, 0.0
        %2085 = vadd.xlane.f32.xlu0 %v2084
        %v2086 = vpop.xlane.xlu0 %2085
        %v2087 = vmul.f32 %v2083, %v451
        %v2088 = vmul.f32 %v2086, %v451
        %v2089 = vadd.f32 %v2087, 1e-05
        %v2090 = vadd.f32 %v2088, 1e-05
        %v2091 = vrsqrt.pop %v2089
        %v2092 = vrsqrt.pop %v2090
        %v2093 = vmul.f32 %v2077, %v2091
        %v2094 = vmul.f32 %v2078, %v2092
        %v2096 = vlaneseq
        %v2097 = vshrl.u32 %v2096, 7
        %v2098 = vsub.s32 0, %v2097
        %v2099 = vrot.slane %v2067, %v2098
        %v2101 = vmul.f32 %v2093, %v2099
        %v2102 = vmul.f32 %v2094, %v2099
        %v2104 = vlaneseq
        %v2105 = vshrl.u32 %v2104, 7
        %v2106 = vsub.s32 0, %v2105
        %v2107 = vrot.slane %v2068, %v2106
        %v2109 = vadd.f32 %v2101, %v2107
        %v2110 = vadd.f32 %v2102, %v2107
        %v2111 = vpack.c.bf16 %v2110, %v2109
        %v2112 = vld [vmem:[%s5] sm:$0xf]
        %v2113 = vld [vmem:[%s5 + $0x4] sm:$0xf]
        %v2114 = vld [vmem:[%s5 + $0x8] sm:$0xf]
        %v2115 = vld [vmem:[%s5 + $0xc] sm:$0xf]
        %v2116 = vld [vmem:[%s5 + $0x10] sm:$0xf]
        %v2117 = vld [vmem:[%s5 + $0x14] sm:$0xf]
        %v2118 = vld [vmem:[%s5 + $0x18] sm:$0xf]
        %v2119 = vld [vmem:[%s5 + $0x1c] sm:$0xf]
        %v2120 = vld [vmem:[%s6] sm:$0x1]
        %v2122 = vlaneseq
        %v2123 = vshrl.u32 %v2122, 7
        %v2124 = vsub.s32 0, %v2123
        %v2125 = vrot.slane %v2120, %v2124
        %v2135 = vunpack.c.l.b16 %v2112
        %v2136 = vunpack.c.l.b16 %v2113
        %v2137 = vunpack.c.l.b16 %v2114
        %v2138 = vunpack.c.l.b16 %v2115
        %v2139 = vunpack.c.l.b16 %v2116
        %v2140 = vunpack.c.l.b16 %v2117
        %v2141 = vunpack.c.l.b16 %v2118
        %v2142 = vunpack.c.l.b16 %v2119
        %v2143 = vpack.c.b16 %v2136, %v2135
        %v2144 = vpack.c.b16 %v2138, %v2137
        %v2145 = vpack.c.b16 %v2140, %v2139
        %v2146 = vpack.c.b16 %v2142, %v2141
        %v2152 = vsel %vm444, %v2111, 0
        %2154 = vmatprep.subr.bf16.mxu0 0
        %2155 = vmatpush1.bf16.msra.mxu0 %v2143
        %2156 = vmatprep.subr.bf16.mxu0 0
        %2157 = vmatpush1.bf16.msra.mxu0 %v2144
        %2158 = vmatprep.subr.bf16.mxu0 0
        %2159 = vmatpush1.bf16.msra.mxu0 %v2145
        %2160 = vmatprep.subr.bf16.mxu0 0
        %2161 = vmatpush1.bf16.msra.mxu0 %v2146
        %2162 = vmatprep.subr.bf16.mxu0 0
        %2163 = vmatpush1.bf16.msra.mxu0 0
        %2164 = vmatprep.subr.bf16.mxu0 0
        %2165 = vmatpush1.bf16.msra.mxu0 0
        %2166 = vmatprep.subr.bf16.mxu0 0
        %2167 = vmatpush1.bf16.msra.mxu0 0
        %2168 = vmatprep.subr.bf16.mxu0 0
        %2169 = vmatpush1.bf16.msra.mxu0 0
        %2170 = vmatprep.subr.bf16.mxu0 0
        %2171 = vmatpush1.bf16.msra.mxu0 0
        %2172 = vmatprep.subr.bf16.mxu0 0
        %2173 = vmatpush1.bf16.msra.mxu0 0
        %2174 = vmatprep.subr.bf16.mxu0 0
        %2175 = vmatpush1.bf16.msra.mxu0 0
        %2176 = vmatprep.subr.bf16.mxu0 0
        %2177 = vmatpush1.bf16.msra.mxu0 0
        %2178 = vmatprep.subr.bf16.mxu0 0
        %2179 = vmatpush1.bf16.msra.mxu0 0
        %2180 = vmatprep.subr.bf16.mxu0 0
        %2181 = vmatpush1.bf16.msra.mxu0 0
        %2182 = vmatprep.subr.bf16.mxu0 0
        %2183 = vmatpush1.bf16.msra.mxu0 0
        %2184 = vmatprep.subr.bf16.mxu0 0
        %2185 = vmatpush1.bf16.msra.mxu0 0
        %2186 = vmatprep.mubr.bf16.mxu0 0
        %2187 = vmatmul.mubr.bf16.gmra.mrb[0].mxu0 %v2152
        %v2188 = vpop.f32.mrb[0].mxu0
        %v2189 = vadd.f32 %v2125, %v2188
        %v2190 = vpop.f32.mrb[0].mxu0
        %v2191 = vpop.f32.mrb[0].mxu0
        %v2192 = vadd.f32 %v2125, %v2191
        %v2193 = vpop.f32.mrb[0].mxu0
        %2194 = vdwg.mxu0
        %v2195 = vmax.f32 %v2189, 0.0
        %v2196 = vmax.f32 %v2192, 0.0
        %v2197 = vpack.c.bf16 %v2196, %v2195
        %v2198 = vld [vmem:[%s7] sm:$0xf]
        %v2199 = vld [vmem:[%s7 + $0x4] sm:$0xf]
        %v2200 = vld [vmem:[%s7 + $0x8] sm:$0xf]
        %v2201 = vld [vmem:[%s7 + $0xc] sm:$0xf]
        %v2202 = vld [vmem:[%s7 + $0x10] sm:$0xf]
        %v2203 = vld [vmem:[%s7 + $0x14] sm:$0xf]
        %v2204 = vld [vmem:[%s7 + $0x18] sm:$0xf]
        %v2205 = vld [vmem:[%s7 + $0x1c] sm:$0xf]
        %v2206 = vld [vmem:[%s7 + $0x20] sm:$0xf]
        %v2207 = vld [vmem:[%s7 + $0x24] sm:$0xf]
        %v2208 = vld [vmem:[%s7 + $0x28] sm:$0xf]
        %v2209 = vld [vmem:[%s7 + $0x2c] sm:$0xf]
        %v2210 = vld [vmem:[%s7 + $0x30] sm:$0xf]
        %v2211 = vld [vmem:[%s7 + $0x34] sm:$0xf]
        %v2212 = vld [vmem:[%s7 + $0x38] sm:$0xf]
        %v2213 = vld [vmem:[%s7 + $0x3c] sm:$0xf]
        %v2214 = vld [vmem:[%s8] sm:$0x1]
        %v2216 = vlaneseq
        %v2217 = vshrl.u32 %v2216, 7
        %v2218 = vsub.s32 0, %v2217
        %v2219 = vrot.slane %v2214, %v2218
        %v2237 = vunpack.c.l.b16 %v2198
        %v2238 = vunpack.c.l.b16 %v2199
        %v2239 = vunpack.c.l.b16 %v2200
        %v2240 = vunpack.c.l.b16 %v2201
        %v2241 = vunpack.c.l.b16 %v2202
        %v2242 = vunpack.c.l.b16 %v2203
        %v2243 = vunpack.c.l.b16 %v2204
        %v2244 = vunpack.c.l.b16 %v2205
        %v2245 = vunpack.c.l.b16 %v2206
        %v2246 = vunpack.c.l.b16 %v2207
        %v2247 = vunpack.c.l.b16 %v2208
        %v2248 = vunpack.c.l.b16 %v2209
        %v2249 = vunpack.c.l.b16 %v2210
        %v2250 = vunpack.c.l.b16 %v2211
        %v2251 = vunpack.c.l.b16 %v2212
        %v2252 = vunpack.c.l.b16 %v2213
        %v2253 = vpack.c.b16 %v2238, %v2237
        %v2254 = vpack.c.b16 %v2240, %v2239
        %v2255 = vpack.c.b16 %v2242, %v2241
        %v2256 = vpack.c.b16 %v2244, %v2243
        %v2257 = vpack.c.b16 %v2246, %v2245
        %v2258 = vpack.c.b16 %v2248, %v2247
        %v2259 = vpack.c.b16 %v2250, %v2249
        %v2260 = vpack.c.b16 %v2252, %v2251
        %2269 = vmatprep.subr.bf16.mxu0 0
        %2270 = vmatpush1.bf16.msra.mxu0 %v2253
        %2271 = vmatprep.subr.bf16.mxu0 0
        %2272 = vmatpush1.bf16.msra.mxu0 %v2254
        %2273 = vmatprep.subr.bf16.mxu0 0
        %2274 = vmatpush1.bf16.msra.mxu0 %v2255
        %2275 = vmatprep.subr.bf16.mxu0 0
        %2276 = vmatpush1.bf16.msra.mxu0 %v2256
        %2277 = vmatprep.subr.bf16.mxu0 0
        %2278 = vmatpush1.bf16.msra.mxu0 %v2257
        %2279 = vmatprep.subr.bf16.mxu0 0
        %2280 = vmatpush1.bf16.msra.mxu0 %v2258
        %2281 = vmatprep.subr.bf16.mxu0 0
        %2282 = vmatpush1.bf16.msra.mxu0 %v2259
        %2283 = vmatprep.subr.bf16.mxu0 0
        %2284 = vmatpush1.bf16.msra.mxu0 %v2260
        %2285 = vmatprep.subr.bf16.mxu0 0
        %2286 = vmatpush1.bf16.msra.mxu0 0
        %2287 = vmatprep.subr.bf16.mxu0 0
        %2288 = vmatpush1.bf16.msra.mxu0 0
        %2289 = vmatprep.subr.bf16.mxu0 0
        %2290 = vmatpush1.bf16.msra.mxu0 0
        %2291 = vmatprep.subr.bf16.mxu0 0
        %2292 = vmatpush1.bf16.msra.mxu0 0
        %2293 = vmatprep.subr.bf16.mxu0 0
        %2294 = vmatpush1.bf16.msra.mxu0 0
        %2295 = vmatprep.subr.bf16.mxu0 0
        %2296 = vmatpush1.bf16.msra.mxu0 0
        %2297 = vmatprep.subr.bf16.mxu0 0
        %2298 = vmatpush1.bf16.msra.mxu0 0
        %2299 = vmatprep.subr.bf16.mxu0 0
        %2300 = vmatpush1.bf16.msra.mxu0 0
        %2301 = vmatprep.mubr.bf16.mxu0 0
        %2302 = vmatmul.mubr.bf16.gmra.mrb[0].mxu0 %v2197
        %v2303 = vpop.f32.mrb[0].mxu0
        %v2304 = vadd.f32 %v2219, %v2303
        %v2305 = vpop.f32.mrb[0].mxu0
        %v2306 = vpop.f32.mrb[0].mxu0
        %v2307 = vadd.f32 %v2219, %v2306
        %v2308 = vpop.f32.mrb[0].mxu0
        %2309 = vdwg.mxu0
        %v2310 = vadd.f32 %v2065, %v2304
        %v2311 = vadd.f32 %v2066, %v2307
        %2312 = vst.msk [vmem:[%s433] sm:$0xff] %vm444, %v2310
        %2313 = vst.msk [vmem:[%s433 + $0x8] sm:$0xff] %vm444, %v2311
        %s2314 = sand.u32 %s313, 1
        %s2315 = scalar_lea.sflag [#allocation3], %s2314
        %s2316 = sand.u32 %s313, 1
        %s2317 = smul.addr %s2316, 16
        %s2318 = scalar_lea.vmem [#allocation2], %s2317
        // Predicated region
        $region73: #{transformer_encoder_layer.1} parent=71 // pred_check
          %p2319 = pneg %p323
        $region74: #{transformer_encoder_layer.1} parent=71 // pred_check_branch
          %2321 = sbr.rel (%p2319) target = $region76
        $region75: #{transformer_encoder_layer.1} parent=71 // pred_region
          %s2323 = ssub.s32 256, 256
          %2324 = vsyncadd %s2315, %s2323
          %s2325 = smul.addr %s27, 2
          %s2326 = smul.addr %s2325, 128
          %s2327 = scalar_lea.hbm %s13, %s2326
          %s2328 = sshll.u32 %s2318, 4
          %s2329 = int_to_ptr.vmem [resolvable:$true] %s2328
          %2334 = dma.vmem_to_hbm [thread:$0]  %s2329, 256, %s2327, %s2315, 128, 128, 8
        $region76: #{transformer_encoder_layer.1} parent=71 // pred_fallthru
          _
      $region72: #{transformer_encoder_layer.1} parent=5 // pred_fallthru
        _
      %p2335 = scmp.le.s32.totalorder 2, %s22
      // Predicated region
      $region77: #{transformer_encoder_layer.1} parent=5 // pred_check
        %p2336 = pneg %p2335
      $region78: #{transformer_encoder_layer.1} parent=5 // pred_check_branch
        %2338 = sbr.rel (%p2336) target = $region80
      $region79: #{transformer_encoder_layer.1} parent=5 // pred_region
        %s2339 = ssub.s32 %s22, 2
        // Predicated region
        $region81: #{transformer_encoder_layer.1} parent=79 // pred_check
          %p2340 = pneg %p329
        $region82: #{transformer_encoder_layer.1} parent=79 // pred_check_branch
          %2342 = sbr.rel (%p2340) target = $region84
        $region83: #{transformer_encoder_layer.1} parent=79 // pred_region
          %s2343 = sand.u32 %s314, 1
          %s2344 = scalar_lea.sflag [#allocation3], %s2343
          %s2345 = sand.u32 %s314, 1
          %s2346 = smul.addr %s2345, 16
          %s2347 = scalar_lea.vmem [#allocation2], %s2346
          %2348 = dma.done %s2344, 256
        $region84: #{transformer_encoder_layer.1} parent=79 // pred_fallthru
          _
      $region80: #{transformer_encoder_layer.1} parent=5 // pred_fallthru
        _
    $region6: #{transformer_encoder_layer.1} parent=1 // loop_footer
      %s26 = sadd.s32 1, %s22
    $region7: #{transformer_encoder_layer.1} parent=1 // loop_footer_branch
      %21 = sbr.rel target = $region3
    $region8: #{transformer_encoder_layer.1} parent=1 // loop_exit
      _
    %2349 = vsyncpa [#allocation3], 1
    %s2350 = scalar_lea.sflag [#allocation3], 1
    %2351 = vsyncpa %s2350, 1

</llo_original>
